<compile_context>
chip_gen: v6e
topology: v6e:2x2x1
jax: 0.10.0
libtpu: 0.0.40
codegen_flags: <defaults>
</compile_context>

<pallas_src>
import functools

import jax
import jax.numpy as jnp
from jax.experimental import pallas as pl
from jax.experimental.pallas import tpu as pltpu

# Padded (lane-aligned) layer widths.
H1_PAD = 384   # 300 -> 384 (3 * 128)
H2_PAD = 128   # 100 -> 128
C_PAD = 128    # 10  -> 128 (lane-dense output store)


def _round_up(x, m):
    return (x + m - 1) // m * m


def _device_kind():
    try:
        return jax.devices()[0].device_kind.lower()
    except Exception:  # pragma: no cover - defensive, e.g. interpret mode
        return ""


_KIND = _device_kind()
# Chips with 2 TensorCores per chip (v7x) / megacore (v4, v5p) benefit from a
# >=2-step "parallel" batch grid; single-TC chips (v5e, v6e) prefer one big tile.
_DUAL_CORE = any(tag in _KIND for tag in ("v7", "v4", "v5p"))
_DEF_BLOCK_B = 1024 if _DUAL_CORE else 2048
# Working set at bm=2048 with f32 x is ~23 MiB (> v5e's 16 MiB default scoped
# VMEM), so raise the limit on single-TC chips; 32 MiB is plenty for bm=1024
# on v7x (64 MiB physical).
_VMEM_LIMIT = (32 << 20) if _DUAL_CORE else (64 << 20)


def _mlp_kernel(x_ref, w1_ref, b1_ref, w2_ref, b2_ref, w3_ref, b3_ref, o_ref):
    # x arrives as f32 (one HBM pass); cast to bf16 in-kernel for the MXU.
    x = x_ref[...].astype(jnp.bfloat16)

    h1 = jnp.dot(x, w1_ref[...], preferred_element_type=jnp.float32) + b1_ref[...]
    h1 = jnp.maximum(h1, 0.0).astype(jnp.bfloat16)

    h2 = jnp.dot(h1, w2_ref[...], preferred_element_type=jnp.float32) + b2_ref[...]
    h2 = jnp.maximum(h2, 0.0).astype(jnp.bfloat16)

    out = jnp.dot(h2, w3_ref[...], preferred_element_type=jnp.float32) + b3_ref[...]
    o_ref[...] = out.astype(o_ref.dtype)  # (bm, 128) lane-dense bf16 store


def prepare_params(params):
    """Zero-pad weights/biases to lane-aligned shapes and cast weights to bf16.

    Padded bias entries are zero and padded weight rows/cols are zero, so the
    extra lanes are mathematically inert through ReLU and the dots.
    """
    w1, b1, w2, b2, w3, b3 = params
    d_in = w1.shape[0]

    def pad2(a, rows, cols):
        return jnp.pad(a, ((0, rows - a.shape[0]), (0, cols - a.shape[1])))

    w1p = pad2(w1, d_in, H1_PAD).astype(jnp.bfloat16)
    b1p = pad2(b1, 1, H1_PAD).astype(jnp.float32)
    w2p = pad2(w2, H1_PAD, H2_PAD).astype(jnp.bfloat16)
    b2p = pad2(b2, 1, H2_PAD).astype(jnp.float32)
    w3p = pad2(w3, H2_PAD, C_PAD).astype(jnp.bfloat16)
    b3p = pad2(b3, 1, C_PAD).astype(jnp.float32)
    return (w1p, b1p, w2p, b2p, w3p, b3p)


@functools.partial(jax.jit, static_argnames=("block_b", "num_classes"))
def batch_net_forward(x, prepared_params, *, block_b=None, num_classes=10):
    """x: (B, 784) float32 -> logits (B, num_classes) float32."""
    if block_b is None:
        block_b = _DEF_BLOCK_B

    w1, b1, w2, b2, w3, b3 = prepared_params
    B, D_in = x.shape
    H1 = w1.shape[1]
    H2 = w2.shape[1]
    C = w3.shape[1]

    # Balanced batch tiles (no wasteful padding to a fixed tile size):
    # rows per tile is a multiple of 8 (f32 sublane); the ragged last tile is
    # handled by Pallas partial-block reads/masked writes.
    num_tiles = pl.cdiv(B, block_b)
    bm = min(_round_up(pl.cdiv(B, num_tiles), 8), _round_up(B, 8))
    grid = (pl.cdiv(B, bm),)

    # Weights / biases are small (<1 MiB total): fetched once, VMEM-resident
    # (constant block index across the grid).
    full = lambda shp: pl.BlockSpec(shp, lambda i: (0,) * len(shp))

    cost = pl.CostEstimate(
        flops=2 * B * (D_in * H1 + H1 * H2 + H2 * C),
        transcendentals=0,
        bytes_accessed=(
            B * D_in * 4                           # x (f32, single pass)
            + B * C * 2                            # logits (bf16)
            + (D_in * H1 + H1 * H2 + H2 * C) * 2   # weights (bf16)
            + (H1 + H2 + C) * 4                    # biases (f32)
        ),
    )

    out = pl.pallas_call(
        _mlp_kernel,
        out_shape=jax.ShapeDtypeStruct((B, C), jnp.bfloat16),
        grid_spec=pltpu.PrefetchScalarGridSpec(
            num_scalar_prefetch=0,
            grid=grid,
            in_specs=[
                pl.BlockSpec((bm, D_in), lambda i: (i, 0)),   # x tile over batch
                full((D_in, H1)),
                full((1, H1)),
                full((H1, H2)),
                full((1, H2)),
                full((H2, C)),
                full((1, C)),
            ],
            out_specs=pl.BlockSpec((bm, C), lambda i: (i, 0)),
        ),
        compiler_params=pltpu.CompilerParams(
            dimension_semantics=("parallel",),
            vmem_limit_bytes=_VMEM_LIMIT,
        ),
        cost_estimate=cost,
    )(x, w1, b1, w2, b2, w3, b3)

    # Slice off the padded (all-zero) logit columns; return f32 logits.
    return out[:, :num_classes].astype(jnp.float32)


def init_params(key, input_size=28 * 28, h1=300, h2=100, num_classes=10):
    """Deterministic init matching PyTorch Linear's U(-1/sqrt(fan_in), 1/sqrt(fan_in))."""
    ks = jax.random.split(key, 6)

    def linear(kw, kb, fan_in, fan_out):
        bound = 1.0 / jnp.sqrt(fan_in)
        w = jax.random.uniform(kw, (fan_in, fan_out), jnp.float32, -bound, bound)
        b = jax.random.uniform(kb, (1, fan_out), jnp.float32, -bound, bound)
        return w, b

    w1, b1 = linear(ks[0], ks[1], input_size, h1)
    w2, b2 = linear(ks[2], ks[3], h1, h2)
    w3, b3 = linear(ks[4], ks[5], h2, num_classes)
    return (w1, b1, w2, b2, w3, b3)


def batch_net_ref(x, params):
    """Pure-JAX f32 reference for correctness checking."""
    w1, b1, w2, b2, w3, b3 = params
    h = jnp.maximum(x @ w1 + b1, 0.0)
    h = jnp.maximum(h @ w2 + b2, 0.0)
    return h @ w3 + b3


# TODO(synk): NNLoad/infer/NNoutput (file loading, PIL preprocessing, argmax print)
# are host-side utilities, not kernel work; only forward() is implemented here.


if __name__ == "__main__":
    key = jax.random.PRNGKey(0)
    k_param, k_x = jax.random.split(key)

    batch = 8
    input_size = 28 * 28  # forward implies a flattened 28x28 MNIST image
    num_classes = 10

    params = init_params(k_param, input_size=input_size, num_classes=num_classes)
    prepared = prepare_params(params)
    x = jax.random.normal(k_x, (batch, input_size), jnp.float32)

    out = batch_net_forward(x, prepared, num_classes=num_classes)
    out = jax.block_until_ready(out)
    assert out.shape == (batch, num_classes), out.shape

    # bf16 MXU operands / bf16 logit store with f32 accumulation: slightly
    # looser tolerance vs the f32 reference.
    ref = batch_net_ref(x, params)
    max_err = float(jnp.max(jnp.abs(out - ref)))
    assert jnp.allclose(out, ref, atol=5e-2, rtol=5e-2), max_err

    print("KERNEL_OK")
</pallas_src>

<mosaic_0001>
module attributes {stable_mosaic.version = 11 : i64} {
  func.func @_mlp_kernel(%arg0: i32, %arg1: memref<8x784xf32, #tpu.memory_space<vmem>>, %arg2: memref<784x384xbf16, #tpu.memory_space<vmem>>, %arg3: memref<1x384xf32, #tpu.memory_space<vmem>>, %arg4: memref<384x128xbf16, #tpu.memory_space<vmem>>, %arg5: memref<1x128xf32, #tpu.memory_space<vmem>>, %arg6: memref<128x128xbf16, #tpu.memory_space<vmem>>, %arg7: memref<1x128xf32, #tpu.memory_space<vmem>>, %arg8: memref<8x128xbf16, #tpu.memory_space<vmem>>) attributes {dimension_semantics = [#tpu.dimension_semantics<parallel>], iteration_bounds = array<i64: 1>, scalar_prefetch = 0 : i64, scratch_operands = 0 : i64, tpu.core_type = #tpu.core_type<tc>, window_params = [{transform_indices = @transform_0, window_bounds = array<i64: 8, 784>}, {pipeline_mode = #tpu.pipeline_mode<synchronous>, transform_indices = @transform_1, window_bounds = array<i64: 784, 384>}, {pipeline_mode = #tpu.pipeline_mode<synchronous>, transform_indices = @transform_2, window_bounds = array<i64: 1, 384>}, {pipeline_mode = #tpu.pipeline_mode<synchronous>, transform_indices = @transform_3, window_bounds = array<i64: 384, 128>}, {pipeline_mode = #tpu.pipeline_mode<synchronous>, transform_indices = @transform_4, window_bounds = array<i64: 1, 128>}, {pipeline_mode = #tpu.pipeline_mode<synchronous>, transform_indices = @transform_5, window_bounds = array<i64: 128, 128>}, {pipeline_mode = #tpu.pipeline_mode<synchronous>, transform_indices = @transform_6, window_bounds = array<i64: 1, 128>}, {transform_indices = @transform_7, window_bounds = array<i64: 8, 128>}]} {
    %c0 = arith.constant 0 : index
    %c0_0 = arith.constant 0 : index
    %0 = vector.load %arg1[%c0, %c0_0] : memref<8x784xf32, #tpu.memory_space<vmem>>, vector<8x784xf32>
    %1 = arith.truncf %0 : vector<8x784xf32> to vector<8x784xbf16>
    %c0_1 = arith.constant 0 : index
    %c0_2 = arith.constant 0 : index
    %2 = vector.load %arg2[%c0_1, %c0_2] : memref<784x384xbf16, #tpu.memory_space<vmem>>, vector<784x384xbf16>
    %cst = arith.constant dense<0.000000e+00> : vector<8x384xf32>
    %3 = tpu.matmul %1, %2, %cst {dimension_numbers = #tpu.dot_dimension_numbers<[1], [0], [0], [1], [0, 0, 1, 1], [], []>} : vector<8x784xbf16>, vector<784x384xbf16>, vector<8x384xf32> -> vector<8x384xf32>
    %c0_3 = arith.constant 0 : index
    %c0_4 = arith.constant 0 : index
    %4 = vector.load %arg3[%c0_3, %c0_4] : memref<1x384xf32, #tpu.memory_space<vmem>>, vector<1x384xf32>
    %5 = vector.broadcast %4 : vector<1x384xf32> to vector<8x384xf32>
    %6 = arith.addf %3, %5 : vector<8x384xf32>
    %cst_5 = arith.constant 0.000000e+00 : f32
    %7 = vector.broadcast %cst_5 : f32 to vector<8x384xf32>
    %8 = arith.maximumf %6, %7 : vector<8x384xf32>
    %9 = arith.truncf %8 : vector<8x384xf32> to vector<8x384xbf16>
    %c0_6 = arith.constant 0 : index
    %c0_7 = arith.constant 0 : index
    %10 = vector.load %arg4[%c0_6, %c0_7] : memref<384x128xbf16, #tpu.memory_space<vmem>>, vector<384x128xbf16>
    %cst_8 = arith.constant dense<0.000000e+00> : vector<8x128xf32>
    %11 = tpu.matmul %9, %10, %cst_8 {dimension_numbers = #tpu.dot_dimension_numbers<[1], [0], [0], [1], [0, 0, 1, 1], [], []>} : vector<8x384xbf16>, vector<384x128xbf16>, vector<8x128xf32> -> vector<8x128xf32>
    %c0_9 = arith.constant 0 : index
    %c0_10 = arith.constant 0 : index
    %12 = vector.load %arg5[%c0_9, %c0_10] : memref<1x128xf32, #tpu.memory_space<vmem>>, vector<1x128xf32>
    %13 = vector.broadcast %12 : vector<1x128xf32> to vector<8x128xf32>
    %14 = arith.addf %11, %13 : vector<8x128xf32>
    %cst_11 = arith.constant 0.000000e+00 : f32
    %15 = vector.broadcast %cst_11 : f32 to vector<8x128xf32>
    %16 = arith.maximumf %14, %15 : vector<8x128xf32>
    %17 = arith.truncf %16 : vector<8x128xf32> to vector<8x128xbf16>
    %c0_12 = arith.constant 0 : index
    %c0_13 = arith.constant 0 : index
    %18 = vector.load %arg6[%c0_12, %c0_13] : memref<128x128xbf16, #tpu.memory_space<vmem>>, vector<128x128xbf16>
    %cst_14 = arith.constant dense<0.000000e+00> : vector<8x128xf32>
    %19 = tpu.matmul %17, %18, %cst_14 {dimension_numbers = #tpu.dot_dimension_numbers<[1], [0], [0], [1], [0, 0, 1, 1], [], []>} : vector<8x128xbf16>, vector<128x128xbf16>, vector<8x128xf32> -> vector<8x128xf32>
    %c0_15 = arith.constant 0 : index
    %c0_16 = arith.constant 0 : index
    %20 = vector.load %arg7[%c0_15, %c0_16] : memref<1x128xf32, #tpu.memory_space<vmem>>, vector<1x128xf32>
    %21 = vector.broadcast %20 : vector<1x128xf32> to vector<8x128xf32>
    %22 = arith.addf %19, %21 : vector<8x128xf32>
    %23 = arith.truncf %22 : vector<8x128xf32> to vector<8x128xbf16>
    %c0_17 = arith.constant 0 : index
    %c0_18 = arith.constant 0 : index
    %24 = vector.load %arg8[%c0_17, %c0_18] : memref<8x128xbf16, #tpu.memory_space<vmem>>, vector<8x128xbf16>
    tpu.vector_store %arg8[%c0_17, %c0_18], %23 {strides = array<i32>} : memref<8x128xbf16, #tpu.memory_space<vmem>>, vector<8x128xbf16>,
    return
  }
  func.func @transform_0(%arg0: i32) -> (i32, i32) {
    %c0_i32 = arith.constant 0 : i32
    %c0_i32_0 = arith.constant 0 : i32
    return %arg0, %c0_i32 : i32, i32
  }
  func.func @transform_1(%arg0: i32) -> (i32, i32) {
    %c0_i32 = arith.constant 0 : i32
    %c0_i32_0 = arith.constant 0 : i32
    %c0_i32_1 = arith.constant 0 : i32
    return %c0_i32, %c0_i32_0 : i32, i32
  }
  func.func @transform_2(%arg0: i32) -> (i32, i32) {
    %c0_i32 = arith.constant 0 : i32
    %c0_i32_0 = arith.constant 0 : i32
    %c0_i32_1 = arith.constant 0 : i32
    return %c0_i32, %c0_i32_0 : i32, i32
  }
  func.func @transform_3(%arg0: i32) -> (i32, i32) {
    %c0_i32 = arith.constant 0 : i32
    %c0_i32_0 = arith.constant 0 : i32
    %c0_i32_1 = arith.constant 0 : i32
    return %c0_i32, %c0_i32_0 : i32, i32
  }
  func.func @transform_4(%arg0: i32) -> (i32, i32) {
    %c0_i32 = arith.constant 0 : i32
    %c0_i32_0 = arith.constant 0 : i32
    %c0_i32_1 = arith.constant 0 : i32
    return %c0_i32, %c0_i32_0 : i32, i32
  }
  func.func @transform_5(%arg0: i32) -> (i32, i32) {
    %c0_i32 = arith.constant 0 : i32
    %c0_i32_0 = arith.constant 0 : i32
    %c0_i32_1 = arith.constant 0 : i32
    return %c0_i32, %c0_i32_0 : i32, i32
  }
  func.func @transform_6(%arg0: i32) -> (i32, i32) {
    %c0_i32 = arith.constant 0 : i32
    %c0_i32_0 = arith.constant 0 : i32
    %c0_i32_1 = arith.constant 0 : i32
    return %c0_i32, %c0_i32_0 : i32, i32
  }
  func.func @transform_7(%arg0: i32) -> (i32, i32) {
    %c0_i32 = arith.constant 0 : i32
    %c0_i32_0 = arith.constant 0 : i32
    return %arg0, %c0_i32 : i32, i32
  }
}

</mosaic_0001>

<llo_original>
// kernel: batch_net_forward.1
$region0: #{batch_net_forward.1}
  #allocation0 [shape = 'u32[]', space=smem, size = 0x4, offset = 0x4, fixed_abs, tag = 'smem constant byte address 0x4 - core index']
  #allocation1 [shape = 'u32[144,128]{1,0:T(1,128)}', space=vmem, size = 0x12000, scoped, tag = 'internal scratch']
  %s0 = inlined_call_operand.hbm [shape: f32[8,784], index: 0, kind: input, shape index: {}]
  %s1 = inlined_call_operand.hbm [shape: bf16[784,384], index: 1, kind: input, shape index: {}]
  %s2 = inlined_call_operand.vmem [shape: f32[1,384], index: 2, kind: input, shape index: {}]
  %s3 = inlined_call_operand.hbm [shape: bf16[384,128], index: 3, kind: input, shape index: {}]
  %s4 = inlined_call_operand.vmem [shape: f32[1,128], index: 4, kind: input, shape index: {}]
  %s5 = inlined_call_operand.hbm [shape: bf16[128,128], index: 5, kind: input, shape index: {}]
  %s6 = inlined_call_operand.vmem [shape: f32[1,128], index: 6, kind: input, shape index: {}]
  %s7 = inlined_call_operand.vmem [shape: bf16[8,128], index: 7, kind: output, shape index: {}]
  %s8 = sld [smem:[#allocation0]]
  $region54: #{batch_net_forward.1} parent=0
    _
  %s10 = ssub.s32 1, %s8
  %s11 = scalar_select 0, %s10, %s8
  $region1: #{batch_net_forward.1} parent=0
    #allocation2 [shape = 'u8[28672]{0}', space=vmem, size = 0x7000, scoped, tag = 'input window, operand 0, single buffered']
    #allocation3 [shape = 's32[1]{0}', space=sflag, size = 0x4, scoped, tag = 'scoped memory for batch_net_forward.1']
    #allocation4 [shape = 'u8[602112]{0}', space=vmem, size = 0x93000, scoped, tag = 'input window, operand 1, single buffered']
    #allocation5 [shape = 's32[1]{0}', space=sflag, size = 0x4, scoped, tag = 'scoped memory for batch_net_forward.1']
    #allocation6 [shape = 'u8[98304]{0}', space=vmem, size = 0x18000, scoped, tag = 'input window, operand 3, single buffered']
    #allocation7 [shape = 'u8[32768]{0}', space=vmem, size = 0x8000, scoped, tag = 'input window, operand 5, single buffered']
    #allocation8 [shape = 's32[1]{0}', space=sflag, size = 0x4, scoped, tag = 'scoped memory for batch_net_forward.1']
    %12 = vsyncpa [#allocation3], 0
    %13 = vsyncpa [#allocation5], 0
    %14 = vsyncpa [#allocation8], 0
    // Predicated region
    $region2: #{batch_net_forward.1} parent=1 // pred_check
      _
    $region3: #{batch_net_forward.1} parent=1 // pred_check_branch
      %16 = sbr.rel (0) target = $region5
    $region4: #{batch_net_forward.1} parent=1 // pred_region
      %s18 = ssub.s32 896, 896
      %19 = vsyncadd [#allocation3], %s18
      %s21 = sshll.u32 [#allocation2], 4
      %s22 = int_to_ptr.vmem [resolvable:$true] %s21
      %24 = dma.hbm_to_vmem [thread:$0]  %s0, 896, %s22, [#allocation3]
    $region5: #{batch_net_forward.1} parent=1 // pred_fallthru
      _
    // Predicated region
    $region6: #{batch_net_forward.1} parent=1 // pred_check
      _
    $region7: #{batch_net_forward.1} parent=1 // pred_check_branch
      %26 = sbr.rel (0) target = $region9
    $region8: #{batch_net_forward.1} parent=1 // pred_region
      %s28 = ssub.s32 18816, 18816
      %29 = vsyncadd [#allocation5], %s28
      %s30 = sshll.u32 [#allocation4], 4
      %s31 = int_to_ptr.vmem [resolvable:$true] %s30
      %36 = dma.hbm_to_vmem [thread:$0]  %s1, 18816, %s31, [#allocation5], 192, 192, 12
    $region9: #{batch_net_forward.1} parent=1 // pred_fallthru
      _
    // Predicated region
    $region10: #{batch_net_forward.1} parent=1 // pred_check
      _
    $region11: #{batch_net_forward.1} parent=1 // pred_check_branch
      %38 = sbr.rel (0) target = $region13
    $region12: #{batch_net_forward.1} parent=1 // pred_region
      _
    $region13: #{batch_net_forward.1} parent=1 // pred_fallthru
      _
    // Predicated region
    $region14: #{batch_net_forward.1} parent=1 // pred_check
      _
    $region15: #{batch_net_forward.1} parent=1 // pred_check_branch
      %40 = sbr.rel (0) target = $region17
    $region16: #{batch_net_forward.1} parent=1 // pred_region
      %s42 = ssub.s32 3072, 3072
      %43 = vsyncadd [#allocation5], %s42
      %s44 = sshll.u32 [#allocation6], 4
      %s45 = int_to_ptr.vmem [resolvable:$true] %s44
      %50 = dma.hbm_to_vmem [thread:$0]  %s3, 3072, %s45, [#allocation5], 64, 64, 4
    $region17: #{batch_net_forward.1} parent=1 // pred_fallthru
      _
    // Predicated region
    $region18: #{batch_net_forward.1} parent=1 // pred_check
      _
    $region19: #{batch_net_forward.1} parent=1 // pred_check_branch
      %52 = sbr.rel (0) target = $region21
    $region20: #{batch_net_forward.1} parent=1 // pred_region
      _
    $region21: #{batch_net_forward.1} parent=1 // pred_fallthru
      _
    // Predicated region
    $region22: #{batch_net_forward.1} parent=1 // pred_check
      _
    $region23: #{batch_net_forward.1} parent=1 // pred_check_branch
      %54 = sbr.rel (0) target = $region25
    $region24: #{batch_net_forward.1} parent=1 // pred_region
      %s56 = ssub.s32 1024, 1024
      %57 = vsyncadd [#allocation8], %s56
      %s58 = sshll.u32 [#allocation7], 4
      %s59 = int_to_ptr.vmem [resolvable:$true] %s58
      %64 = dma.hbm_to_vmem [thread:$0]  %s5, 1024, %s59, [#allocation8], 64, 64, 4
    $region25: #{batch_net_forward.1} parent=1 // pred_fallthru
      _
    // Predicated region
    $region26: #{batch_net_forward.1} parent=1 // pred_check
      _
    $region27: #{batch_net_forward.1} parent=1 // pred_check_branch
      %66 = sbr.rel (0) target = $region29
    $region28: #{batch_net_forward.1} parent=1 // pred_region
      _
    $region29: #{batch_net_forward.1} parent=1 // pred_fallthru
      _
    // Predicated region
    $region30: #{batch_net_forward.1} parent=1 // pred_check
      _
    $region31: #{batch_net_forward.1} parent=1 // pred_check_branch
      %68 = sbr.rel (0) target = $region33
    $region32: #{batch_net_forward.1} parent=1 // pred_region
      %69 = dma.done [#allocation3], 896
    $region33: #{batch_net_forward.1} parent=1 // pred_fallthru
      _
    // Predicated region
    $region34: #{batch_net_forward.1} parent=1 // pred_check
      _
    $region35: #{batch_net_forward.1} parent=1 // pred_check_branch
      %71 = sbr.rel (0) target = $region37
    $region36: #{batch_net_forward.1} parent=1 // pred_region
      %72 = dma.done [#allocation5], 18816
    $region37: #{batch_net_forward.1} parent=1 // pred_fallthru
      _
    // Predicated region
    $region38: #{batch_net_forward.1} parent=1 // pred_check
      _
    $region39: #{batch_net_forward.1} parent=1 // pred_check_branch
      %74 = sbr.rel (0) target = $region41
    $region40: #{batch_net_forward.1} parent=1 // pred_region
      %75 = dma.done [#allocation5], 3072
    $region41: #{batch_net_forward.1} parent=1 // pred_fallthru
      _
    // Predicated region
    $region42: #{batch_net_forward.1} parent=1 // pred_check
      _
    $region43: #{batch_net_forward.1} parent=1 // pred_check_branch
      %77 = sbr.rel (0) target = $region45
    $region44: #{batch_net_forward.1} parent=1 // pred_region
      %78 = dma.done [#allocation8], 1024
    $region45: #{batch_net_forward.1} parent=1 // pred_fallthru
      _
    %v80 = vld [vmem:[#allocation2] sm:$0xff]
    %v81 = vld [vmem:[#allocation2 + $0x8] sm:$0xff]
    %v82 = vld [vmem:[#allocation2 + $0x10] sm:$0xff]
    %v83 = vld [vmem:[#allocation2 + $0x18] sm:$0xff]
    %v84 = vld [vmem:[#allocation2 + $0x20] sm:$0xff]
    %v85 = vld [vmem:[#allocation2 + $0x28] sm:$0xff]
    %v86 = vld [vmem:[#allocation2 + $0x30] sm:$0xff]
    %v87 = vpack.c.bf16 %v80, %v80
    %v88 = vpack.c.bf16 %v81, %v81
    %v89 = vpack.c.bf16 %v82, %v82
    %v90 = vpack.c.bf16 %v83, %v83
    %v91 = vpack.c.bf16 %v84, %v84
    %v92 = vpack.c.bf16 %v85, %v85
    %v93 = vpack.c.bf16 %v86, %v86
    %v94 = vld [vmem:[#allocation4] sm:$0xff]
    %v95 = vld [vmem:[#allocation4 + $0x8] sm:$0xf]
    %v96 = vld [vmem:[#allocation4 + $0xc] sm:$0xff]
    %v97 = vld [vmem:[#allocation4 + $0x14] sm:$0xf]
    %v98 = vld [vmem:[#allocation4 + $0x18] sm:$0xff]
    %v99 = vld [vmem:[#allocation4 + $0x20] sm:$0xf]
    %v100 = vld [vmem:[#allocation4 + $0x24] sm:$0xff]
    %v101 = vld [vmem:[#allocation4 + $0x2c] sm:$0xf]
    %v102 = vld [vmem:[#allocation4 + $0x30] sm:$0xff]
    %v103 = vld [vmem:[#allocation4 + $0x38] sm:$0xf]
    %v104 = vld [vmem:[#allocation4 + $0x3c] sm:$0xff]
    %v105 = vld [vmem:[#allocation4 + $0x44] sm:$0xf]
    %v106 = vld [vmem:[#allocation4 + $0x48] sm:$0xff]
    %v107 = vld [vmem:[#allocation4 + $0x50] sm:$0xf]
    %v108 = vld [vmem:[#allocation4 + $0x54] sm:$0xff]
    %v109 = vld [vmem:[#allocation4 + $0x5c] sm:$0xf]
    %v110 = vld [vmem:[#allocation4 + $0x60] sm:$0xff]
    %v111 = vld [vmem:[#allocation4 + $0x68] sm:$0xf]
    %v112 = vld [vmem:[#allocation4 + $0x6c] sm:$0xff]
    %v113 = vld [vmem:[#allocation4 + $0x74] sm:$0xf]
    %v114 = vld [vmem:[#allocation4 + $0x78] sm:$0xff]
    %v115 = vld [vmem:[#allocation4 + $0x80] sm:$0xf]
    %v116 = vld [vmem:[#allocation4 + $0x84] sm:$0xff]
    %v117 = vld [vmem:[#allocation4 + $0x8c] sm:$0xf]
    %v118 = vld [vmem:[#allocation4 + $0x90] sm:$0xff]
    %v119 = vld [vmem:[#allocation4 + $0x98] sm:$0xf]
    %v120 = vld [vmem:[#allocation4 + $0x9c] sm:$0xff]
    %v121 = vld [vmem:[#allocation4 + $0xa4] sm:$0xf]
    %v122 = vld [vmem:[#allocation4 + $0xa8] sm:$0xff]
    %v123 = vld [vmem:[#allocation4 + $0xb0] sm:$0xf]
    %v124 = vld [vmem:[#allocation4 + $0xb4] sm:$0xff]
    %v125 = vld [vmem:[#allocation4 + $0xbc] sm:$0xf]
    %v126 = vld [vmem:[#allocation4 + $0xc0] sm:$0xff]
    %v127 = vld [vmem:[#allocation4 + $0xc8] sm:$0xf]
    %v128 = vld [vmem:[#allocation4 + $0xcc] sm:$0xff]
    %v129 = vld [vmem:[#allocation4 + $0xd4] sm:$0xf]
    %v130 = vld [vmem:[#allocation4 + $0xd8] sm:$0xff]
    %v131 = vld [vmem:[#allocation4 + $0xe0] sm:$0xf]
    %v132 = vld [vmem:[#allocation4 + $0xe4] sm:$0xff]
    %v133 = vld [vmem:[#allocation4 + $0xec] sm:$0xf]
    %v134 = vld [vmem:[#allocation4 + $0xf0] sm:$0xff]
    %v135 = vld [vmem:[#allocation4 + $0xf8] sm:$0xf]
    %v136 = vld [vmem:[#allocation4 + $0xfc] sm:$0xff]
    %v137 = vld [vmem:[#allocation4 + $0x104] sm:$0xf]
    %v138 = vld [vmem:[#allocation4 + $0x108] sm:$0xff]
    %v139 = vld [vmem:[#allocation4 + $0x110] sm:$0xf]
    %v140 = vld [vmem:[#allocation4 + $0x114] sm:$0xff]
    %v141 = vld [vmem:[#allocation4 + $0x11c] sm:$0xf]
    %v142 = vld [vmem:[#allocation4 + $0x120] sm:$0xff]
    %v143 = vld [vmem:[#allocation4 + $0x128] sm:$0xf]
    %v144 = vld [vmem:[#allocation4 + $0x12c] sm:$0xff]
    %v145 = vld [vmem:[#allocation4 + $0x134] sm:$0xf]
    %v146 = vld [vmem:[#allocation4 + $0x138] sm:$0xff]
    %v147 = vld [vmem:[#allocation4 + $0x140] sm:$0xf]
    %v148 = vld [vmem:[#allocation4 + $0x144] sm:$0xff]
    %v149 = vld [vmem:[#allocation4 + $0x14c] sm:$0xf]
    %v150 = vld [vmem:[#allocation4 + $0x150] sm:$0xff]
    %v151 = vld [vmem:[#allocation4 + $0x158] sm:$0xf]
    %v152 = vld [vmem:[#allocation4 + $0x15c] sm:$0xff]
    %v153 = vld [vmem:[#allocation4 + $0x164] sm:$0xf]
    %v154 = vld [vmem:[#allocation4 + $0x168] sm:$0xff]
    %v155 = vld [vmem:[#allocation4 + $0x170] sm:$0xf]
    %v156 = vld [vmem:[#allocation4 + $0x174] sm:$0xff]
    %v157 = vld [vmem:[#allocation4 + $0x17c] sm:$0xf]
    %v158 = vld [vmem:[#allocation4 + $0x180] sm:$0xff]
    %v159 = vld [vmem:[#allocation4 + $0x188] sm:$0xf]
    %v160 = vld [vmem:[#allocation4 + $0x18c] sm:$0xff]
    %v161 = vld [vmem:[#allocation4 + $0x194] sm:$0xf]
    %v162 = vld [vmem:[#allocation4 + $0x198] sm:$0xff]
    %v163 = vld [vmem:[#allocation4 + $0x1a0] sm:$0xf]
    %v164 = vld [vmem:[#allocation4 + $0x1a4] sm:$0xff]
    %v165 = vld [vmem:[#allocation4 + $0x1ac] sm:$0xf]
    %v166 = vld [vmem:[#allocation4 + $0x1b0] sm:$0xff]
    %v167 = vld [vmem:[#allocation4 + $0x1b8] sm:$0xf]
    %v168 = vld [vmem:[#allocation4 + $0x1bc] sm:$0xff]
    %v169 = vld [vmem:[#allocation4 + $0x1c4] sm:$0xf]
    %v170 = vld [vmem:[#allocation4 + $0x1c8] sm:$0xff]
    %v171 = vld [vmem:[#allocation4 + $0x1d0] sm:$0xf]
    %v172 = vld [vmem:[#allocation4 + $0x1d4] sm:$0xff]
    %v173 = vld [vmem:[#allocation4 + $0x1dc] sm:$0xf]
    %v174 = vld [vmem:[#allocation4 + $0x1e0] sm:$0xff]
    %v175 = vld [vmem:[#allocation4 + $0x1e8] sm:$0xf]
    %v176 = vld [vmem:[#allocation4 + $0x1ec] sm:$0xff]
    %v177 = vld [vmem:[#allocation4 + $0x1f4] sm:$0xf]
    %v178 = vld [vmem:[#allocation4 + $0x1f8] sm:$0xff]
    %v179 = vld [vmem:[#allocation4 + $0x200] sm:$0xf]
    %v180 = vld [vmem:[#allocation4 + $0x204] sm:$0xff]
    %v181 = vld [vmem:[#allocation4 + $0x20c] sm:$0xf]
    %v182 = vld [vmem:[#allocation4 + $0x210] sm:$0xff]
    %v183 = vld [vmem:[#allocation4 + $0x218] sm:$0xf]
    %v184 = vld [vmem:[#allocation4 + $0x21c] sm:$0xff]
    %v185 = vld [vmem:[#allocation4 + $0x224] sm:$0xf]
    %v186 = vld [vmem:[#allocation4 + $0x228] sm:$0xff]
    %v187 = vld [vmem:[#allocation4 + $0x230] sm:$0xf]
    %v188 = vld [vmem:[#allocation4 + $0x234] sm:$0xff]
    %v189 = vld [vmem:[#allocation4 + $0x23c] sm:$0xf]
    %v190 = vld [vmem:[#allocation4 + $0x240] sm:$0xff]
    %v191 = vld [vmem:[#allocation4 + $0x248] sm:$0xf]
    %v192 = vld [vmem:[#allocation4 + $0x24c] sm:$0xff]
    %v193 = vld [vmem:[#allocation4 + $0x254] sm:$0xf]
    %v194 = vld [vmem:[#allocation4 + $0x258] sm:$0xff]
    %v195 = vld [vmem:[#allocation4 + $0x260] sm:$0xf]
    %v196 = vld [vmem:[#allocation4 + $0x264] sm:$0xff]
    %v197 = vld [vmem:[#allocation4 + $0x26c] sm:$0xf]
    %v198 = vld [vmem:[#allocation4 + $0x270] sm:$0xff]
    %v199 = vld [vmem:[#allocation4 + $0x278] sm:$0xf]
    %v200 = vld [vmem:[#allocation4 + $0x27c] sm:$0xff]
    %v201 = vld [vmem:[#allocation4 + $0x284] sm:$0xf]
    %v202 = vld [vmem:[#allocation4 + $0x288] sm:$0xff]
    %v203 = vld [vmem:[#allocation4 + $0x290] sm:$0xf]
    %v204 = vld [vmem:[#allocation4 + $0x294] sm:$0xff]
    %v205 = vld [vmem:[#allocation4 + $0x29c] sm:$0xf]
    %v206 = vld [vmem:[#allocation4 + $0x2a0] sm:$0xff]
    %v207 = vld [vmem:[#allocation4 + $0x2a8] sm:$0xf]
    %v208 = vld [vmem:[#allocation4 + $0x2ac] sm:$0xff]
    %v209 = vld [vmem:[#allocation4 + $0x2b4] sm:$0xf]
    %v210 = vld [vmem:[#allocation4 + $0x2b8] sm:$0xff]
    %v211 = vld [vmem:[#allocation4 + $0x2c0] sm:$0xf]
    %v212 = vld [vmem:[#allocation4 + $0x2c4] sm:$0xff]
    %v213 = vld [vmem:[#allocation4 + $0x2cc] sm:$0xf]
    %v214 = vld [vmem:[#allocation4 + $0x2d0] sm:$0xff]
    %v215 = vld [vmem:[#allocation4 + $0x2d8] sm:$0xf]
    %v216 = vld [vmem:[#allocation4 + $0x2dc] sm:$0xff]
    %v217 = vld [vmem:[#allocation4 + $0x2e4] sm:$0xf]
    %v218 = vld [vmem:[#allocation4 + $0x2e8] sm:$0xff]
    %v219 = vld [vmem:[#allocation4 + $0x2f0] sm:$0xf]
    %v220 = vld [vmem:[#allocation4 + $0x2f4] sm:$0xff]
    %v221 = vld [vmem:[#allocation4 + $0x2fc] sm:$0xf]
    %v222 = vld [vmem:[#allocation4 + $0x300] sm:$0xff]
    %v223 = vld [vmem:[#allocation4 + $0x308] sm:$0xf]
    %v224 = vld [vmem:[#allocation4 + $0x30c] sm:$0xff]
    %v225 = vld [vmem:[#allocation4 + $0x314] sm:$0xf]
    %v226 = vld [vmem:[#allocation4 + $0x318] sm:$0xff]
    %v227 = vld [vmem:[#allocation4 + $0x320] sm:$0xf]
    %v228 = vld [vmem:[#allocation4 + $0x324] sm:$0xff]
    %v229 = vld [vmem:[#allocation4 + $0x32c] sm:$0xf]
    %v230 = vld [vmem:[#allocation4 + $0x330] sm:$0xff]
    %v231 = vld [vmem:[#allocation4 + $0x338] sm:$0xf]
    %v232 = vld [vmem:[#allocation4 + $0x33c] sm:$0xff]
    %v233 = vld [vmem:[#allocation4 + $0x344] sm:$0xf]
    %v234 = vld [vmem:[#allocation4 + $0x348] sm:$0xff]
    %v235 = vld [vmem:[#allocation4 + $0x350] sm:$0xf]
    %v236 = vld [vmem:[#allocation4 + $0x354] sm:$0xff]
    %v237 = vld [vmem:[#allocation4 + $0x35c] sm:$0xf]
    %v238 = vld [vmem:[#allocation4 + $0x360] sm:$0xff]
    %v239 = vld [vmem:[#allocation4 + $0x368] sm:$0xf]
    %v240 = vld [vmem:[#allocation4 + $0x36c] sm:$0xff]
    %v241 = vld [vmem:[#allocation4 + $0x374] sm:$0xf]
    %v242 = vld [vmem:[#allocation4 + $0x378] sm:$0xff]
    %v243 = vld [vmem:[#allocation4 + $0x380] sm:$0xf]
    %v244 = vld [vmem:[#allocation4 + $0x384] sm:$0xff]
    %v245 = vld [vmem:[#allocation4 + $0x38c] sm:$0xf]
    %v246 = vld [vmem:[#allocation4 + $0x390] sm:$0xff]
    %v247 = vld [vmem:[#allocation4 + $0x398] sm:$0xf]
    %v248 = vld [vmem:[#allocation4 + $0x39c] sm:$0xff]
    %v249 = vld [vmem:[#allocation4 + $0x3a4] sm:$0xf]
    %v250 = vld [vmem:[#allocation4 + $0x3a8] sm:$0xff]
    %v251 = vld [vmem:[#allocation4 + $0x3b0] sm:$0xf]
    %v252 = vld [vmem:[#allocation4 + $0x3b4] sm:$0xff]
    %v253 = vld [vmem:[#allocation4 + $0x3bc] sm:$0xf]
    %v254 = vld [vmem:[#allocation4 + $0x3c0] sm:$0xff]
    %v255 = vld [vmem:[#allocation4 + $0x3c8] sm:$0xf]
    %v256 = vld [vmem:[#allocation4 + $0x3cc] sm:$0xff]
    %v257 = vld [vmem:[#allocation4 + $0x3d4] sm:$0xf]
    %v258 = vld [vmem:[#allocation4 + $0x3d8] sm:$0xff]
    %v259 = vld [vmem:[#allocation4 + $0x3e0] sm:$0xf]
    %v260 = vld [vmem:[#allocation4 + $0x3e4] sm:$0xff]
    %v261 = vld [vmem:[#allocation4 + $0x3ec] sm:$0xf]
    %v262 = vld [vmem:[#allocation4 + $0x3f0] sm:$0xff]
    %v263 = vld [vmem:[#allocation4 + $0x3f8] sm:$0xf]
    %v264 = vld [vmem:[#allocation4 + $0x3fc] sm:$0xff]
    %v265 = vld [vmem:[#allocation4 + $0x404] sm:$0xf]
    %v266 = vld [vmem:[#allocation4 + $0x408] sm:$0xff]
    %v267 = vld [vmem:[#allocation4 + $0x410] sm:$0xf]
    %v268 = vld [vmem:[#allocation4 + $0x414] sm:$0xff]
    %v269 = vld [vmem:[#allocation4 + $0x41c] sm:$0xf]
    %v270 = vld [vmem:[#allocation4 + $0x420] sm:$0xff]
    %v271 = vld [vmem:[#allocation4 + $0x428] sm:$0xf]
    %v272 = vld [vmem:[#allocation4 + $0x42c] sm:$0xff]
    %v273 = vld [vmem:[#allocation4 + $0x434] sm:$0xf]
    %v274 = vld [vmem:[#allocation4 + $0x438] sm:$0xff]
    %v275 = vld [vmem:[#allocation4 + $0x440] sm:$0xf]
    %v276 = vld [vmem:[#allocation4 + $0x444] sm:$0xff]
    %v277 = vld [vmem:[#allocation4 + $0x44c] sm:$0xf]
    %v278 = vld [vmem:[#allocation4 + $0x450] sm:$0xff]
    %v279 = vld [vmem:[#allocation4 + $0x458] sm:$0xf]
    %v280 = vld [vmem:[#allocation4 + $0x45c] sm:$0xff]
    %v281 = vld [vmem:[#allocation4 + $0x464] sm:$0xf]
    %v282 = vld [vmem:[#allocation4 + $0x468] sm:$0xff]
    %v283 = vld [vmem:[#allocation4 + $0x470] sm:$0xf]
    %v284 = vld [vmem:[#allocation4 + $0x474] sm:$0xff]
    %v285 = vld [vmem:[#allocation4 + $0x47c] sm:$0xf]
    %v286 = vld [vmem:[#allocation4 + $0x480] sm:$0xff]
    %v287 = vld [vmem:[#allocation4 + $0x488] sm:$0xf]
    %v288 = vld [vmem:[#allocation4 + $0x48c] sm:$0xff]
    %v289 = vld [vmem:[#allocation4 + $0x494] sm:$0xf]
    %v290 = vld [vmem:[%s2] sm:$0x7]
    %v292 = vlaneseq
    %v293 = vshrl.u32 %v292, 7
    %v294 = vsub.s32 0, %v293
    %v295 = vrot.slane %v290, %v294
    %v296 = vlaneseq
    %v297 = vshrl.u32 %v296, 7
    %v298 = vsub.s32 1, %v297
    %v299 = vrot.slane %v290, %v298
    %v300 = vlaneseq
    %v301 = vshrl.u32 %v300, 7
    %v302 = vsub.s32 2, %v301
    %v303 = vrot.slane %v290, %v302
    %v503 = vunpack.c.l.b16 %v94
    %v504 = vunpack.c.h.b16 %v94
    %v505 = vunpack.c.l.b16 %v95
    %v506 = vunpack.c.l.b16 %v96
    %v507 = vunpack.c.h.b16 %v96
    %v508 = vunpack.c.l.b16 %v97
    %v509 = vunpack.c.l.b16 %v98
    %v510 = vunpack.c.h.b16 %v98
    %v511 = vunpack.c.l.b16 %v99
    %v512 = vunpack.c.l.b16 %v100
    %v513 = vunpack.c.h.b16 %v100
    %v514 = vunpack.c.l.b16 %v101
    %v515 = vunpack.c.l.b16 %v102
    %v516 = vunpack.c.h.b16 %v102
    %v517 = vunpack.c.l.b16 %v103
    %v518 = vunpack.c.l.b16 %v104
    %v519 = vunpack.c.h.b16 %v104
    %v520 = vunpack.c.l.b16 %v105
    %v521 = vunpack.c.l.b16 %v106
    %v522 = vunpack.c.h.b16 %v106
    %v523 = vunpack.c.l.b16 %v107
    %v524 = vunpack.c.l.b16 %v108
    %v525 = vunpack.c.h.b16 %v108
    %v526 = vunpack.c.l.b16 %v109
    %v527 = vunpack.c.l.b16 %v110
    %v528 = vunpack.c.h.b16 %v110
    %v529 = vunpack.c.l.b16 %v111
    %v530 = vunpack.c.l.b16 %v112
    %v531 = vunpack.c.h.b16 %v112
    %v532 = vunpack.c.l.b16 %v113
    %v533 = vunpack.c.l.b16 %v114
    %v534 = vunpack.c.h.b16 %v114
    %v535 = vunpack.c.l.b16 %v115
    %v536 = vunpack.c.l.b16 %v116
    %v537 = vunpack.c.h.b16 %v116
    %v538 = vunpack.c.l.b16 %v117
    %v539 = vunpack.c.l.b16 %v118
    %v540 = vunpack.c.h.b16 %v118
    %v541 = vunpack.c.l.b16 %v119
    %v542 = vunpack.c.l.b16 %v120
    %v543 = vunpack.c.h.b16 %v120
    %v544 = vunpack.c.l.b16 %v121
    %v545 = vunpack.c.l.b16 %v122
    %v546 = vunpack.c.h.b16 %v122
    %v547 = vunpack.c.l.b16 %v123
    %v548 = vunpack.c.l.b16 %v124
    %v549 = vunpack.c.h.b16 %v124
    %v550 = vunpack.c.l.b16 %v125
    %v551 = vunpack.c.l.b16 %v126
    %v552 = vunpack.c.h.b16 %v126
    %v553 = vunpack.c.l.b16 %v127
    %v554 = vunpack.c.l.b16 %v128
    %v555 = vunpack.c.h.b16 %v128
    %v556 = vunpack.c.l.b16 %v129
    %v557 = vunpack.c.l.b16 %v130
    %v558 = vunpack.c.h.b16 %v130
    %v559 = vunpack.c.l.b16 %v131
    %v560 = vunpack.c.l.b16 %v132
    %v561 = vunpack.c.h.b16 %v132
    %v562 = vunpack.c.l.b16 %v133
    %v563 = vunpack.c.l.b16 %v134
    %v564 = vunpack.c.h.b16 %v134
    %v565 = vunpack.c.l.b16 %v135
    %v566 = vunpack.c.l.b16 %v136
    %v567 = vunpack.c.h.b16 %v136
    %v568 = vunpack.c.l.b16 %v137
    %v569 = vunpack.c.l.b16 %v138
    %v570 = vunpack.c.h.b16 %v138
    %v571 = vunpack.c.l.b16 %v139
    %v572 = vunpack.c.l.b16 %v140
    %v573 = vunpack.c.h.b16 %v140
    %v574 = vunpack.c.l.b16 %v141
    %v575 = vunpack.c.l.b16 %v142
    %v576 = vunpack.c.h.b16 %v142
    %v577 = vunpack.c.l.b16 %v143
    %v578 = vunpack.c.l.b16 %v144
    %v579 = vunpack.c.h.b16 %v144
    %v580 = vunpack.c.l.b16 %v145
    %v581 = vunpack.c.l.b16 %v146
    %v582 = vunpack.c.h.b16 %v146
    %v583 = vunpack.c.l.b16 %v147
    %v584 = vunpack.c.l.b16 %v148
    %v585 = vunpack.c.h.b16 %v148
    %v586 = vunpack.c.l.b16 %v149
    %v587 = vunpack.c.l.b16 %v150
    %v588 = vunpack.c.h.b16 %v150
    %v589 = vunpack.c.l.b16 %v151
    %v590 = vunpack.c.l.b16 %v152
    %v591 = vunpack.c.h.b16 %v152
    %v592 = vunpack.c.l.b16 %v153
    %v593 = vunpack.c.l.b16 %v154
    %v594 = vunpack.c.h.b16 %v154
    %v595 = vunpack.c.l.b16 %v155
    %v596 = vunpack.c.l.b16 %v156
    %v597 = vunpack.c.h.b16 %v156
    %v598 = vunpack.c.l.b16 %v157
    %v599 = vunpack.c.l.b16 %v158
    %v600 = vunpack.c.h.b16 %v158
    %v601 = vunpack.c.l.b16 %v159
    %v602 = vunpack.c.l.b16 %v160
    %v603 = vunpack.c.h.b16 %v160
    %v604 = vunpack.c.l.b16 %v161
    %v605 = vunpack.c.l.b16 %v162
    %v606 = vunpack.c.h.b16 %v162
    %v607 = vunpack.c.l.b16 %v163
    %v608 = vunpack.c.l.b16 %v164
    %v609 = vunpack.c.h.b16 %v164
    %v610 = vunpack.c.l.b16 %v165
    %v611 = vunpack.c.l.b16 %v166
    %v612 = vunpack.c.h.b16 %v166
    %v613 = vunpack.c.l.b16 %v167
    %v614 = vunpack.c.l.b16 %v168
    %v615 = vunpack.c.h.b16 %v168
    %v616 = vunpack.c.l.b16 %v169
    %v617 = vunpack.c.l.b16 %v170
    %v618 = vunpack.c.h.b16 %v170
    %v619 = vunpack.c.l.b16 %v171
    %v620 = vunpack.c.l.b16 %v172
    %v621 = vunpack.c.h.b16 %v172
    %v622 = vunpack.c.l.b16 %v173
    %v623 = vunpack.c.l.b16 %v174
    %v624 = vunpack.c.h.b16 %v174
    %v625 = vunpack.c.l.b16 %v175
    %v626 = vunpack.c.l.b16 %v176
    %v627 = vunpack.c.h.b16 %v176
    %v628 = vunpack.c.l.b16 %v177
    %v629 = vunpack.c.l.b16 %v178
    %v630 = vunpack.c.h.b16 %v178
    %v631 = vunpack.c.l.b16 %v179
    %v632 = vunpack.c.l.b16 %v180
    %v633 = vunpack.c.h.b16 %v180
    %v634 = vunpack.c.l.b16 %v181
    %v635 = vunpack.c.l.b16 %v182
    %v636 = vunpack.c.h.b16 %v182
    %v637 = vunpack.c.l.b16 %v183
    %v638 = vunpack.c.l.b16 %v184
    %v639 = vunpack.c.h.b16 %v184
    %v640 = vunpack.c.l.b16 %v185
    %v641 = vunpack.c.l.b16 %v186
    %v642 = vunpack.c.h.b16 %v186
    %v643 = vunpack.c.l.b16 %v187
    %v644 = vunpack.c.l.b16 %v188
    %v645 = vunpack.c.h.b16 %v188
    %v646 = vunpack.c.l.b16 %v189
    %v647 = vunpack.c.l.b16 %v190
    %v648 = vunpack.c.h.b16 %v190
    %v649 = vunpack.c.l.b16 %v191
    %v650 = vunpack.c.l.b16 %v192
    %v651 = vunpack.c.h.b16 %v192
    %v652 = vunpack.c.l.b16 %v193
    %v653 = vunpack.c.l.b16 %v194
    %v654 = vunpack.c.h.b16 %v194
    %v655 = vunpack.c.l.b16 %v195
    %v656 = vunpack.c.l.b16 %v196
    %v657 = vunpack.c.h.b16 %v196
    %v658 = vunpack.c.l.b16 %v197
    %v659 = vunpack.c.l.b16 %v198
    %v660 = vunpack.c.h.b16 %v198
    %v661 = vunpack.c.l.b16 %v199
    %v662 = vunpack.c.l.b16 %v200
    %v663 = vunpack.c.h.b16 %v200
    %v664 = vunpack.c.l.b16 %v201
    %v665 = vunpack.c.l.b16 %v202
    %v666 = vunpack.c.h.b16 %v202
    %v667 = vunpack.c.l.b16 %v203
    %v668 = vunpack.c.l.b16 %v204
    %v669 = vunpack.c.h.b16 %v204
    %v670 = vunpack.c.l.b16 %v205
    %v671 = vunpack.c.l.b16 %v206
    %v672 = vunpack.c.h.b16 %v206
    %v673 = vunpack.c.l.b16 %v207
    %v674 = vunpack.c.l.b16 %v208
    %v675 = vunpack.c.h.b16 %v208
    %v676 = vunpack.c.l.b16 %v209
    %v677 = vunpack.c.l.b16 %v210
    %v678 = vunpack.c.h.b16 %v210
    %v679 = vunpack.c.l.b16 %v211
    %v680 = vunpack.c.l.b16 %v212
    %v681 = vunpack.c.h.b16 %v212
    %v682 = vunpack.c.l.b16 %v213
    %v683 = vunpack.c.l.b16 %v214
    %v684 = vunpack.c.h.b16 %v214
    %v685 = vunpack.c.l.b16 %v215
    %v686 = vunpack.c.l.b16 %v216
    %v687 = vunpack.c.h.b16 %v216
    %v688 = vunpack.c.l.b16 %v217
    %v689 = vunpack.c.l.b16 %v218
    %v690 = vunpack.c.h.b16 %v218
    %v691 = vunpack.c.l.b16 %v219
    %v692 = vunpack.c.l.b16 %v220
    %v693 = vunpack.c.h.b16 %v220
    %v694 = vunpack.c.l.b16 %v221
    %v695 = vunpack.c.l.b16 %v222
    %v696 = vunpack.c.h.b16 %v222
    %v697 = vunpack.c.l.b16 %v223
    %v698 = vunpack.c.l.b16 %v224
    %v699 = vunpack.c.h.b16 %v224
    %v700 = vunpack.c.l.b16 %v225
    %v701 = vunpack.c.l.b16 %v226
    %v702 = vunpack.c.h.b16 %v226
    %v703 = vunpack.c.l.b16 %v227
    %v704 = vunpack.c.l.b16 %v228
    %v705 = vunpack.c.h.b16 %v228
    %v706 = vunpack.c.l.b16 %v229
    %v707 = vunpack.c.l.b16 %v230
    %v708 = vunpack.c.h.b16 %v230
    %v709 = vunpack.c.l.b16 %v231
    %v710 = vunpack.c.l.b16 %v232
    %v711 = vunpack.c.h.b16 %v232
    %v712 = vunpack.c.l.b16 %v233
    %v713 = vunpack.c.l.b16 %v234
    %v714 = vunpack.c.h.b16 %v234
    %v715 = vunpack.c.l.b16 %v235
    %v716 = vunpack.c.l.b16 %v236
    %v717 = vunpack.c.h.b16 %v236
    %v718 = vunpack.c.l.b16 %v237
    %v719 = vunpack.c.l.b16 %v238
    %v720 = vunpack.c.h.b16 %v238
    %v721 = vunpack.c.l.b16 %v239
    %v722 = vunpack.c.l.b16 %v240
    %v723 = vunpack.c.h.b16 %v240
    %v724 = vunpack.c.l.b16 %v241
    %v725 = vunpack.c.l.b16 %v242
    %v726 = vunpack.c.h.b16 %v242
    %v727 = vunpack.c.l.b16 %v243
    %v728 = vunpack.c.l.b16 %v244
    %v729 = vunpack.c.h.b16 %v244
    %v730 = vunpack.c.l.b16 %v245
    %v731 = vunpack.c.l.b16 %v246
    %v732 = vunpack.c.h.b16 %v246
    %v733 = vunpack.c.l.b16 %v247
    %v734 = vunpack.c.l.b16 %v248
    %v735 = vunpack.c.h.b16 %v248
    %v736 = vunpack.c.l.b16 %v249
    %v737 = vunpack.c.l.b16 %v250
    %v738 = vunpack.c.h.b16 %v250
    %v739 = vunpack.c.l.b16 %v251
    %v740 = vunpack.c.l.b16 %v252
    %v741 = vunpack.c.h.b16 %v252
    %v742 = vunpack.c.l.b16 %v253
    %v743 = vunpack.c.l.b16 %v254
    %v744 = vunpack.c.h.b16 %v254
    %v745 = vunpack.c.l.b16 %v255
    %v746 = vunpack.c.l.b16 %v256
    %v747 = vunpack.c.h.b16 %v256
    %v748 = vunpack.c.l.b16 %v257
    %v749 = vunpack.c.l.b16 %v258
    %v750 = vunpack.c.h.b16 %v258
    %v751 = vunpack.c.l.b16 %v259
    %v752 = vunpack.c.l.b16 %v260
    %v753 = vunpack.c.h.b16 %v260
    %v754 = vunpack.c.l.b16 %v261
    %v755 = vunpack.c.l.b16 %v262
    %v756 = vunpack.c.h.b16 %v262
    %v757 = vunpack.c.l.b16 %v263
    %v758 = vunpack.c.l.b16 %v264
    %v759 = vunpack.c.h.b16 %v264
    %v760 = vunpack.c.l.b16 %v265
    %v761 = vunpack.c.l.b16 %v266
    %v762 = vunpack.c.h.b16 %v266
    %v763 = vunpack.c.l.b16 %v267
    %v764 = vunpack.c.l.b16 %v268
    %v765 = vunpack.c.h.b16 %v268
    %v766 = vunpack.c.l.b16 %v269
    %v767 = vunpack.c.l.b16 %v270
    %v768 = vunpack.c.h.b16 %v270
    %v769 = vunpack.c.l.b16 %v271
    %v770 = vunpack.c.l.b16 %v272
    %v771 = vunpack.c.h.b16 %v272
    %v772 = vunpack.c.l.b16 %v273
    %v773 = vunpack.c.l.b16 %v274
    %v774 = vunpack.c.h.b16 %v274
    %v775 = vunpack.c.l.b16 %v275
    %v776 = vunpack.c.l.b16 %v276
    %v777 = vunpack.c.h.b16 %v276
    %v778 = vunpack.c.l.b16 %v277
    %v779 = vunpack.c.l.b16 %v278
    %v780 = vunpack.c.h.b16 %v278
    %v781 = vunpack.c.l.b16 %v279
    %v782 = vunpack.c.l.b16 %v280
    %v783 = vunpack.c.h.b16 %v280
    %v784 = vunpack.c.l.b16 %v281
    %v785 = vunpack.c.l.b16 %v282
    %v786 = vunpack.c.h.b16 %v282
    %v787 = vunpack.c.l.b16 %v283
    %v788 = vunpack.c.l.b16 %v284
    %v789 = vunpack.c.h.b16 %v284
    %v790 = vunpack.c.l.b16 %v285
    %v791 = vunpack.c.l.b16 %v286
    %v792 = vunpack.c.h.b16 %v286
    %v793 = vunpack.c.l.b16 %v287
    %v794 = vunpack.c.l.b16 %v288
    %v795 = vunpack.c.h.b16 %v288
    %v796 = vunpack.c.l.b16 %v289
    %v797 = vpack.c.b16 %v506, %v503
    %v798 = vpack.c.b16 %v507, %v504
    %v799 = vpack.c.b16 %v508, %v505
    %v800 = vpack.c.b16 %v512, %v509
    %v801 = vpack.c.b16 %v513, %v510
    %v802 = vpack.c.b16 %v514, %v511
    %v803 = vpack.c.b16 %v518, %v515
    %v804 = vpack.c.b16 %v519, %v516
    %v805 = vpack.c.b16 %v520, %v517
    %v806 = vpack.c.b16 %v524, %v521
    %v807 = vpack.c.b16 %v525, %v522
    %v808 = vpack.c.b16 %v526, %v523
    %v809 = vpack.c.b16 %v530, %v527
    %v810 = vpack.c.b16 %v531, %v528
    %v811 = vpack.c.b16 %v532, %v529
    %v812 = vpack.c.b16 %v536, %v533
    %v813 = vpack.c.b16 %v537, %v534
    %v814 = vpack.c.b16 %v538, %v535
    %v815 = vpack.c.b16 %v542, %v539
    %v816 = vpack.c.b16 %v543, %v540
    %v817 = vpack.c.b16 %v544, %v541
    %v818 = vpack.c.b16 %v548, %v545
    %v819 = vpack.c.b16 %v549, %v546
    %v820 = vpack.c.b16 %v550, %v547
    %v821 = vpack.c.b16 %v554, %v551
    %v822 = vpack.c.b16 %v555, %v552
    %v823 = vpack.c.b16 %v556, %v553
    %v824 = vpack.c.b16 %v560, %v557
    %v825 = vpack.c.b16 %v561, %v558
    %v826 = vpack.c.b16 %v562, %v559
    %v827 = vpack.c.b16 %v566, %v563
    %v828 = vpack.c.b16 %v567, %v564
    %v829 = vpack.c.b16 %v568, %v565
    %v830 = vpack.c.b16 %v572, %v569
    %v831 = vpack.c.b16 %v573, %v570
    %v832 = vpack.c.b16 %v574, %v571
    %v833 = vpack.c.b16 %v578, %v575
    %v834 = vpack.c.b16 %v579, %v576
    %v835 = vpack.c.b16 %v580, %v577
    %v836 = vpack.c.b16 %v584, %v581
    %v837 = vpack.c.b16 %v585, %v582
    %v838 = vpack.c.b16 %v586, %v583
    %v839 = vpack.c.b16 %v590, %v587
    %v840 = vpack.c.b16 %v591, %v588
    %v841 = vpack.c.b16 %v592, %v589
    %v842 = vpack.c.b16 %v596, %v593
    %v843 = vpack.c.b16 %v597, %v594
    %v844 = vpack.c.b16 %v598, %v595
    %v845 = vpack.c.b16 %v602, %v599
    %v846 = vpack.c.b16 %v603, %v600
    %v847 = vpack.c.b16 %v604, %v601
    %v848 = vpack.c.b16 %v608, %v605
    %v849 = vpack.c.b16 %v609, %v606
    %v850 = vpack.c.b16 %v610, %v607
    %v851 = vpack.c.b16 %v614, %v611
    %v852 = vpack.c.b16 %v615, %v612
    %v853 = vpack.c.b16 %v616, %v613
    %v854 = vpack.c.b16 %v620, %v617
    %v855 = vpack.c.b16 %v621, %v618
    %v856 = vpack.c.b16 %v622, %v619
    %v857 = vpack.c.b16 %v626, %v623
    %v858 = vpack.c.b16 %v627, %v624
    %v859 = vpack.c.b16 %v628, %v625
    %v860 = vpack.c.b16 %v632, %v629
    %v861 = vpack.c.b16 %v633, %v630
    %v862 = vpack.c.b16 %v634, %v631
    %v863 = vpack.c.b16 %v638, %v635
    %v864 = vpack.c.b16 %v639, %v636
    %v865 = vpack.c.b16 %v640, %v637
    %v866 = vpack.c.b16 %v644, %v641
    %v867 = vpack.c.b16 %v645, %v642
    %v868 = vpack.c.b16 %v646, %v643
    %v869 = vpack.c.b16 %v650, %v647
    %v870 = vpack.c.b16 %v651, %v648
    %v871 = vpack.c.b16 %v652, %v649
    %v872 = vpack.c.b16 %v656, %v653
    %v873 = vpack.c.b16 %v657, %v654
    %v874 = vpack.c.b16 %v658, %v655
    %v875 = vpack.c.b16 %v662, %v659
    %v876 = vpack.c.b16 %v663, %v660
    %v877 = vpack.c.b16 %v664, %v661
    %v878 = vpack.c.b16 %v668, %v665
    %v879 = vpack.c.b16 %v669, %v666
    %v880 = vpack.c.b16 %v670, %v667
    %v881 = vpack.c.b16 %v674, %v671
    %v882 = vpack.c.b16 %v675, %v672
    %v883 = vpack.c.b16 %v676, %v673
    %v884 = vpack.c.b16 %v680, %v677
    %v885 = vpack.c.b16 %v681, %v678
    %v886 = vpack.c.b16 %v682, %v679
    %v887 = vpack.c.b16 %v686, %v683
    %v888 = vpack.c.b16 %v687, %v684
    %v889 = vpack.c.b16 %v688, %v685
    %v890 = vpack.c.b16 %v692, %v689
    %v891 = vpack.c.b16 %v693, %v690
    %v892 = vpack.c.b16 %v694, %v691
    %v893 = vpack.c.b16 %v698, %v695
    %v894 = vpack.c.b16 %v699, %v696
    %v895 = vpack.c.b16 %v700, %v697
    %v896 = vpack.c.b16 %v704, %v701
    %v897 = vpack.c.b16 %v705, %v702
    %v898 = vpack.c.b16 %v706, %v703
    %v899 = vpack.c.b16 %v710, %v707
    %v900 = vpack.c.b16 %v711, %v708
    %v901 = vpack.c.b16 %v712, %v709
    %v902 = vpack.c.b16 %v716, %v713
    %v903 = vpack.c.b16 %v717, %v714
    %v904 = vpack.c.b16 %v718, %v715
    %v905 = vpack.c.b16 %v722, %v719
    %v906 = vpack.c.b16 %v723, %v720
    %v907 = vpack.c.b16 %v724, %v721
    %v908 = vpack.c.b16 %v728, %v725
    %v909 = vpack.c.b16 %v729, %v726
    %v910 = vpack.c.b16 %v730, %v727
    %v911 = vpack.c.b16 %v734, %v731
    %v912 = vpack.c.b16 %v735, %v732
    %v913 = vpack.c.b16 %v736, %v733
    %v914 = vpack.c.b16 %v740, %v737
    %v915 = vpack.c.b16 %v741, %v738
    %v916 = vpack.c.b16 %v742, %v739
    %v917 = vpack.c.b16 %v746, %v743
    %v918 = vpack.c.b16 %v747, %v744
    %v919 = vpack.c.b16 %v748, %v745
    %v920 = vpack.c.b16 %v752, %v749
    %v921 = vpack.c.b16 %v753, %v750
    %v922 = vpack.c.b16 %v754, %v751
    %v923 = vpack.c.b16 %v758, %v755
    %v924 = vpack.c.b16 %v759, %v756
    %v925 = vpack.c.b16 %v760, %v757
    %v926 = vpack.c.b16 %v764, %v761
    %v927 = vpack.c.b16 %v765, %v762
    %v928 = vpack.c.b16 %v766, %v763
    %v929 = vpack.c.b16 %v770, %v767
    %v930 = vpack.c.b16 %v771, %v768
    %v931 = vpack.c.b16 %v772, %v769
    %v932 = vpack.c.b16 %v776, %v773
    %v933 = vpack.c.b16 %v777, %v774
    %v934 = vpack.c.b16 %v778, %v775
    %v935 = vpack.c.b16 %v782, %v779
    %v936 = vpack.c.b16 %v783, %v780
    %v937 = vpack.c.b16 %v784, %v781
    %v938 = vpack.c.b16 %v788, %v785
    %v939 = vpack.c.b16 %v789, %v786
    %v940 = vpack.c.b16 %v790, %v787
    %v941 = vpack.c.b16 %v794, %v791
    %v942 = vpack.c.b16 %v795, %v792
    %v943 = vpack.c.b16 %v796, %v793
    %vm1091 = vcmask 130048
    %v1093 = vsel %vm1091, %v93, 0
    %1095 = vmatprep.subr.bf16.mxu0 %v819
    %1096 = vmatpush1.bf16.msra.mxu0 %v818
    %1097 = vmatprep.subr.bf16.mxu0 %v816
    %1098 = vmatpush1.bf16.msra.mxu0 %v815
    %1099 = vmatprep.subr.bf16.mxu0 %v813
    %1100 = vmatpush1.bf16.msra.mxu0 %v812
    %1101 = vmatprep.subr.bf16.mxu0 %v810
    %1102 = vmatpush1.bf16.msra.mxu0 %v809
    %1103 = vmatprep.subr.bf16.mxu0 %v807
    %1104 = vmatpush1.bf16.msra.mxu0 %v806
    %1105 = vmatprep.subr.bf16.mxu0 %v804
    %1106 = vmatpush1.bf16.msra.mxu0 %v803
    %1107 = vmatprep.subr.bf16.mxu0 %v801
    %1108 = vmatpush1.bf16.msra.mxu0 %v800
    %1109 = vmatprep.subr.bf16.mxu0 %v798
    %1110 = vmatpush1.bf16.msra.mxu0 %v797
    %1111 = vmatprep.subr.bf16.mxu0 %v843
    %1112 = vmatpush2.bf16.msra.mxu0 %v842
    %1113 = vmatprep.subr.bf16.mxu0 %v840
    %1114 = vmatpush2.bf16.msra.mxu0 %v839
    %1115 = vmatprep.subr.bf16.mxu0 %v837
    %1116 = vmatpush2.bf16.msra.mxu0 %v836
    %1117 = vmatprep.subr.bf16.mxu0 %v834
    %1118 = vmatpush2.bf16.msra.mxu0 %v833
    %1119 = vmatprep.subr.bf16.mxu0 %v831
    %1120 = vmatpush2.bf16.msra.mxu0 %v830
    %1121 = vmatprep.subr.bf16.mxu0 %v828
    %1122 = vmatpush2.bf16.msra.mxu0 %v827
    %1123 = vmatprep.subr.bf16.mxu0 %v825
    %1124 = vmatpush2.bf16.msra.mxu0 %v824
    %1125 = vmatprep.subr.bf16.mxu0 %v822
    %1126 = vmatpush2.bf16.msra.mxu0 %v821
    %1127 = vmatprep.mubr.bf16.mxu0 %v88
    %1128 = vmatmul.mubr.bf16.gmra.mxu0 %v87
    %v1129 = vpop.f32.mrf.mxu0
    %v1130 = vadd.f32 %v295, %v1129
    %v1131 = vpop.f32.mrf.mxu0
    %v1132 = vadd.f32 %v299, %v1131
    %v1133 = vpop.f32.mrf.mxu0
    %v1134 = vpop.f32.mrf.mxu0
    %1135 = vdwg.mxu0
    %1136 = vmatprep.subr.bf16.mxu0 %v867
    %1137 = vmatpush1.bf16.msra.mxu0 %v866
    %1138 = vmatprep.subr.bf16.mxu0 %v864
    %1139 = vmatpush1.bf16.msra.mxu0 %v863
    %1140 = vmatprep.subr.bf16.mxu0 %v861
    %1141 = vmatpush1.bf16.msra.mxu0 %v860
    %1142 = vmatprep.subr.bf16.mxu0 %v858
    %1143 = vmatpush1.bf16.msra.mxu0 %v857
    %1144 = vmatprep.subr.bf16.mxu0 %v855
    %1145 = vmatpush1.bf16.msra.mxu0 %v854
    %1146 = vmatprep.subr.bf16.mxu0 %v852
    %1147 = vmatpush1.bf16.msra.mxu0 %v851
    %1148 = vmatprep.subr.bf16.mxu0 %v849
    %1149 = vmatpush1.bf16.msra.mxu0 %v848
    %1150 = vmatprep.subr.bf16.mxu0 %v846
    %1151 = vmatpush1.bf16.msra.mxu0 %v845
    %1152 = vmatprep.subr.bf16.mxu0 %v891
    %1153 = vmatpush2.bf16.msra.mxu0 %v890
    %1154 = vmatprep.subr.bf16.mxu0 %v888
    %1155 = vmatpush2.bf16.msra.mxu0 %v887
    %1156 = vmatprep.subr.bf16.mxu0 %v885
    %1157 = vmatpush2.bf16.msra.mxu0 %v884
    %1158 = vmatprep.subr.bf16.mxu0 %v882
    %1159 = vmatpush2.bf16.msra.mxu0 %v881
    %1160 = vmatprep.subr.bf16.mxu0 %v879
    %1161 = vmatpush2.bf16.msra.mxu0 %v878
    %1162 = vmatprep.subr.bf16.mxu0 %v876
    %1163 = vmatpush2.bf16.msra.mxu0 %v875
    %1164 = vmatprep.subr.bf16.mxu0 %v873
    %1165 = vmatpush2.bf16.msra.mxu0 %v872
    %1166 = vmatprep.subr.bf16.mxu0 %v870
    %1167 = vmatpush2.bf16.msra.mxu0 %v869
    %1168 = vmatprep.mubr.bf16.mxu0 %v90
    %1169 = vmatmul.mubr.bf16.gmra.mxu0 %v89
    %v1170 = vpop.f32.mrf.mxu0
    %v1171 = vadd.f32 %v1130, %v1170
    %v1172 = vpop.f32.mrf.mxu0
    %v1173 = vadd.f32 %v1132, %v1172
    %v1174 = vpop.f32.mrf.mxu0
    %v1175 = vpop.f32.mrf.mxu0
    %1176 = vdwg.mxu0
    %1177 = vmatprep.subr.bf16.mxu0 %v915
    %1178 = vmatpush1.bf16.msra.mxu0 %v914
    %1179 = vmatprep.subr.bf16.mxu0 %v912
    %1180 = vmatpush1.bf16.msra.mxu0 %v911
    %1181 = vmatprep.subr.bf16.mxu0 %v909
    %1182 = vmatpush1.bf16.msra.mxu0 %v908
    %1183 = vmatprep.subr.bf16.mxu0 %v906
    %1184 = vmatpush1.bf16.msra.mxu0 %v905
    %1185 = vmatprep.subr.bf16.mxu0 %v903
    %1186 = vmatpush1.bf16.msra.mxu0 %v902
    %1187 = vmatprep.subr.bf16.mxu0 %v900
    %1188 = vmatpush1.bf16.msra.mxu0 %v899
    %1189 = vmatprep.subr.bf16.mxu0 %v897
    %1190 = vmatpush1.bf16.msra.mxu0 %v896
    %1191 = vmatprep.subr.bf16.mxu0 %v894
    %1192 = vmatpush1.bf16.msra.mxu0 %v893
    %1193 = vmatprep.subr.bf16.mxu0 %v939
    %1194 = vmatpush2.bf16.msra.mxu0 %v938
    %1195 = vmatprep.subr.bf16.mxu0 %v936
    %1196 = vmatpush2.bf16.msra.mxu0 %v935
    %1197 = vmatprep.subr.bf16.mxu0 %v933
    %1198 = vmatpush2.bf16.msra.mxu0 %v932
    %1199 = vmatprep.subr.bf16.mxu0 %v930
    %1200 = vmatpush2.bf16.msra.mxu0 %v929
    %1201 = vmatprep.subr.bf16.mxu0 %v927
    %1202 = vmatpush2.bf16.msra.mxu0 %v926
    %1203 = vmatprep.subr.bf16.mxu0 %v924
    %1204 = vmatpush2.bf16.msra.mxu0 %v923
    %1205 = vmatprep.subr.bf16.mxu0 %v921
    %1206 = vmatpush2.bf16.msra.mxu0 %v920
    %1207 = vmatprep.subr.bf16.mxu0 %v918
    %1208 = vmatpush2.bf16.msra.mxu0 %v917
    %1209 = vmatprep.mubr.bf16.mxu0 %v92
    %1210 = vmatmul.mubr.bf16.gmra.mxu0 %v91
    %v1211 = vpop.f32.mrf.mxu0
    %v1212 = vadd.f32 %v1171, %v1211
    %v1213 = vpop.f32.mrf.mxu0
    %v1214 = vadd.f32 %v1173, %v1213
    %v1215 = vpop.f32.mrf.mxu0
    %v1216 = vpop.f32.mrf.mxu0
    %1217 = vdwg.mxu0
    %1218 = vmatprep.subr.bf16.mxu0 0
    %1219 = vmatpush1.bf16.msra.mxu0 0
    %1220 = vmatprep.subr.bf16.mxu0 0
    %1221 = vmatpush1.bf16.msra.mxu0 0
    %1222 = vmatprep.subr.bf16.mxu0 0
    %1223 = vmatpush1.bf16.msra.mxu0 0
    %1224 = vmatprep.subr.bf16.mxu0 0
    %1225 = vmatpush1.bf16.msra.mxu0 0
    %1226 = vmatprep.subr.bf16.mxu0 0
    %1227 = vmatpush1.bf16.msra.mxu0 0
    %1228 = vmatprep.subr.bf16.mxu0 0
    %1229 = vmatpush1.bf16.msra.mxu0 0
    %1230 = vmatprep.subr.bf16.mxu0 0
    %1231 = vmatpush1.bf16.msra.mxu0 0
    %1232 = vmatprep.subr.bf16.mxu0 %v942
    %1233 = vmatpush1.bf16.msra.mxu0 %v941
    %1234 = vmatprep.subr.bf16.mxu0 0
    %1235 = vmatpush2.bf16.msra.mxu0 0
    %1236 = vmatprep.subr.bf16.mxu0 0
    %1237 = vmatpush2.bf16.msra.mxu0 0
    %1238 = vmatprep.subr.bf16.mxu0 0
    %1239 = vmatpush2.bf16.msra.mxu0 0
    %1240 = vmatprep.subr.bf16.mxu0 0
    %1241 = vmatpush2.bf16.msra.mxu0 0
    %1242 = vmatprep.subr.bf16.mxu0 0
    %1243 = vmatpush2.bf16.msra.mxu0 0
    %1244 = vmatprep.subr.bf16.mxu0 0
    %1245 = vmatpush2.bf16.msra.mxu0 0
    %1246 = vmatprep.subr.bf16.mxu0 0
    %1247 = vmatpush2.bf16.msra.mxu0 0
    %1248 = vmatprep.subr.bf16.mxu0 0
    %1249 = vmatpush2.bf16.msra.mxu0 0
    %1250 = vmatprep.mubr.bf16.mxu0 0
    %1251 = vmatmul.mubr.bf16.gmra.mxu0 %v1093
    %v1252 = vpop.f32.mrf.mxu0
    %v1253 = vadd.f32 %v1212, %v1252
    %v1254 = vpop.f32.mrf.mxu0
    %v1255 = vadd.f32 %v1214, %v1254
    %v1256 = vpop.f32.mrf.mxu0
    %v1257 = vpop.f32.mrf.mxu0
    %1258 = vdwg.mxu0
    %1259 = vmatprep.subr.bf16.mxu0 0
    %1260 = vmatpush1.bf16.msra.mxu0 %v820
    %1261 = vmatprep.subr.bf16.mxu0 0
    %1262 = vmatpush1.bf16.msra.mxu0 %v817
    %1263 = vmatprep.subr.bf16.mxu0 0
    %1264 = vmatpush1.bf16.msra.mxu0 %v814
    %1265 = vmatprep.subr.bf16.mxu0 0
    %1266 = vmatpush1.bf16.msra.mxu0 %v811
    %1267 = vmatprep.subr.bf16.mxu0 0
    %1268 = vmatpush1.bf16.msra.mxu0 %v808
    %1269 = vmatprep.subr.bf16.mxu0 0
    %1270 = vmatpush1.bf16.msra.mxu0 %v805
    %1271 = vmatprep.subr.bf16.mxu0 0
    %1272 = vmatpush1.bf16.msra.mxu0 %v802
    %1273 = vmatprep.subr.bf16.mxu0 0
    %1274 = vmatpush1.bf16.msra.mxu0 %v799
    %1275 = vmatprep.subr.bf16.mxu0 0
    %1276 = vmatpush2.bf16.msra.mxu0 %v844
    %1277 = vmatprep.subr.bf16.mxu0 0
    %1278 = vmatpush2.bf16.msra.mxu0 %v841
    %1279 = vmatprep.subr.bf16.mxu0 0
    %1280 = vmatpush2.bf16.msra.mxu0 %v838
    %1281 = vmatprep.subr.bf16.mxu0 0
    %1282 = vmatpush2.bf16.msra.mxu0 %v835
    %1283 = vmatprep.subr.bf16.mxu0 0
    %1284 = vmatpush2.bf16.msra.mxu0 %v832
    %1285 = vmatprep.subr.bf16.mxu0 0
    %1286 = vmatpush2.bf16.msra.mxu0 %v829
    %1287 = vmatprep.subr.bf16.mxu0 0
    %1288 = vmatpush2.bf16.msra.mxu0 %v826
    %1289 = vmatprep.subr.bf16.mxu0 0
    %1290 = vmatpush2.bf16.msra.mxu0 %v823
    %1291 = vmatprep.mubr.bf16.mxu0 %v88
    %1292 = vmatmul.mubr.bf16.gmra.mxu0 %v87
    %v1293 = vpop.f32.mrf.mxu0
    %v1294 = vadd.f32 %v303, %v1293
    %v1295 = vpop.f32.mrf.mxu0
    %v1296 = vpop.f32.mrf.mxu0
    %v1297 = vpop.f32.mrf.mxu0
    %1298 = vdwg.mxu0
    %1299 = vmatprep.subr.bf16.mxu0 0
    %1300 = vmatpush1.bf16.msra.mxu0 %v868
    %1301 = vmatprep.subr.bf16.mxu0 0
    %1302 = vmatpush1.bf16.msra.mxu0 %v865
    %1303 = vmatprep.subr.bf16.mxu0 0
    %1304 = vmatpush1.bf16.msra.mxu0 %v862
    %1305 = vmatprep.subr.bf16.mxu0 0
    %1306 = vmatpush1.bf16.msra.mxu0 %v859
    %1307 = vmatprep.subr.bf16.mxu0 0
    %1308 = vmatpush1.bf16.msra.mxu0 %v856
    %1309 = vmatprep.subr.bf16.mxu0 0
    %1310 = vmatpush1.bf16.msra.mxu0 %v853
    %1311 = vmatprep.subr.bf16.mxu0 0
    %1312 = vmatpush1.bf16.msra.mxu0 %v850
    %1313 = vmatprep.subr.bf16.mxu0 0
    %1314 = vmatpush1.bf16.msra.mxu0 %v847
    %1315 = vmatprep.subr.bf16.mxu0 0
    %1316 = vmatpush2.bf16.msra.mxu0 %v892
    %1317 = vmatprep.subr.bf16.mxu0 0
    %1318 = vmatpush2.bf16.msra.mxu0 %v889
    %1319 = vmatprep.subr.bf16.mxu0 0
    %1320 = vmatpush2.bf16.msra.mxu0 %v886
    %1321 = vmatprep.subr.bf16.mxu0 0
    %1322 = vmatpush2.bf16.msra.mxu0 %v883
    %1323 = vmatprep.subr.bf16.mxu0 0
    %1324 = vmatpush2.bf16.msra.mxu0 %v880
    %1325 = vmatprep.subr.bf16.mxu0 0
    %1326 = vmatpush2.bf16.msra.mxu0 %v877
    %1327 = vmatprep.subr.bf16.mxu0 0
    %1328 = vmatpush2.bf16.msra.mxu0 %v874
    %1329 = vmatprep.subr.bf16.mxu0 0
    %1330 = vmatpush2.bf16.msra.mxu0 %v871
    %1331 = vmatprep.mubr.bf16.mxu0 %v90
    %1332 = vmatmul.mubr.bf16.gmra.mxu0 %v89
    %v1333 = vpop.f32.mrf.mxu0
    %v1334 = vadd.f32 %v1294, %v1333
    %v1335 = vpop.f32.mrf.mxu0
    %v1336 = vpop.f32.mrf.mxu0
    %v1337 = vpop.f32.mrf.mxu0
    %1338 = vdwg.mxu0
    %1339 = vmatprep.subr.bf16.mxu0 0
    %1340 = vmatpush1.bf16.msra.mxu0 %v916
    %1341 = vmatprep.subr.bf16.mxu0 0
    %1342 = vmatpush1.bf16.msra.mxu0 %v913
    %1343 = vmatprep.subr.bf16.mxu0 0
    %1344 = vmatpush1.bf16.msra.mxu0 %v910
    %1345 = vmatprep.subr.bf16.mxu0 0
    %1346 = vmatpush1.bf16.msra.mxu0 %v907
    %1347 = vmatprep.subr.bf16.mxu0 0
    %1348 = vmatpush1.bf16.msra.mxu0 %v904
    %1349 = vmatprep.subr.bf16.mxu0 0
    %1350 = vmatpush1.bf16.msra.mxu0 %v901
    %1351 = vmatprep.subr.bf16.mxu0 0
    %1352 = vmatpush1.bf16.msra.mxu0 %v898
    %1353 = vmatprep.subr.bf16.mxu0 0
    %1354 = vmatpush1.bf16.msra.mxu0 %v895
    %1355 = vmatprep.subr.bf16.mxu0 0
    %1356 = vmatpush2.bf16.msra.mxu0 %v940
    %1357 = vmatprep.subr.bf16.mxu0 0
    %1358 = vmatpush2.bf16.msra.mxu0 %v937
    %1359 = vmatprep.subr.bf16.mxu0 0
    %1360 = vmatpush2.bf16.msra.mxu0 %v934
    %1361 = vmatprep.subr.bf16.mxu0 0
    %1362 = vmatpush2.bf16.msra.mxu0 %v931
    %1363 = vmatprep.subr.bf16.mxu0 0
    %1364 = vmatpush2.bf16.msra.mxu0 %v928
    %1365 = vmatprep.subr.bf16.mxu0 0
    %1366 = vmatpush2.bf16.msra.mxu0 %v925
    %1367 = vmatprep.subr.bf16.mxu0 0
    %1368 = vmatpush2.bf16.msra.mxu0 %v922
    %1369 = vmatprep.subr.bf16.mxu0 0
    %1370 = vmatpush2.bf16.msra.mxu0 %v919
    %1371 = vmatprep.mubr.bf16.mxu0 %v92
    %1372 = vmatmul.mubr.bf16.gmra.mxu0 %v91
    %v1373 = vpop.f32.mrf.mxu0
    %v1374 = vadd.f32 %v1334, %v1373
    %v1375 = vpop.f32.mrf.mxu0
    %v1376 = vpop.f32.mrf.mxu0
    %v1377 = vpop.f32.mrf.mxu0
    %1378 = vdwg.mxu0
    %1379 = vmatprep.subr.bf16.mxu0 0
    %1380 = vmatpush1.bf16.msra.mxu0 0
    %1381 = vmatprep.subr.bf16.mxu0 0
    %1382 = vmatpush1.bf16.msra.mxu0 0
    %1383 = vmatprep.subr.bf16.mxu0 0
    %1384 = vmatpush1.bf16.msra.mxu0 0
    %1385 = vmatprep.subr.bf16.mxu0 0
    %1386 = vmatpush1.bf16.msra.mxu0 0
    %1387 = vmatprep.subr.bf16.mxu0 0
    %1388 = vmatpush1.bf16.msra.mxu0 0
    %1389 = vmatprep.subr.bf16.mxu0 0
    %1390 = vmatpush1.bf16.msra.mxu0 0
    %1391 = vmatprep.subr.bf16.mxu0 0
    %1392 = vmatpush1.bf16.msra.mxu0 0
    %1393 = vmatprep.subr.bf16.mxu0 0
    %1394 = vmatpush1.bf16.msra.mxu0 %v943
    %1395 = vmatprep.subr.bf16.mxu0 0
    %1396 = vmatpush2.bf16.msra.mxu0 0
    %1397 = vmatprep.subr.bf16.mxu0 0
    %1398 = vmatpush2.bf16.msra.mxu0 0
    %1399 = vmatprep.subr.bf16.mxu0 0
    %1400 = vmatpush2.bf16.msra.mxu0 0
    %1401 = vmatprep.subr.bf16.mxu0 0
    %1402 = vmatpush2.bf16.msra.mxu0 0
    %1403 = vmatprep.subr.bf16.mxu0 0
    %1404 = vmatpush2.bf16.msra.mxu0 0
    %1405 = vmatprep.subr.bf16.mxu0 0
    %1406 = vmatpush2.bf16.msra.mxu0 0
    %1407 = vmatprep.subr.bf16.mxu0 0
    %1408 = vmatpush2.bf16.msra.mxu0 0
    %1409 = vmatprep.subr.bf16.mxu0 0
    %1410 = vmatpush2.bf16.msra.mxu0 0
    %1411 = vmatprep.mubr.bf16.mxu0 0
    %1412 = vmatmul.mubr.bf16.gmra.mxu0 %v1093
    %v1413 = vpop.f32.mrf.mxu0
    %v1414 = vadd.f32 %v1374, %v1413
    %v1415 = vpop.f32.mrf.mxu0
    %v1416 = vpop.f32.mrf.mxu0
    %v1417 = vpop.f32.mrf.mxu0
    %1418 = vdwg.mxu0
    %v1419 = vmax.f32 %v1253, 0.0
    %v1420 = vmax.f32 %v1255, 0.0
    %v1421 = vmax.f32 %v1414, 0.0
    %v1422 = vpack.c.bf16 %v1419, %v1419
    %v1423 = vpack.c.bf16 %v1420, %v1420
    %v1424 = vpack.c.bf16 %v1421, %v1421
    %v1425 = vld [vmem:[#allocation6] sm:$0xf]
    %v1426 = vld [vmem:[#allocation6 + $0x4] sm:$0xf]
    %v1427 = vld [vmem:[#allocation6 + $0x8] sm:$0xf]
    %v1428 = vld [vmem:[#allocation6 + $0xc] sm:$0xf]
    %v1429 = vld [vmem:[#allocation6 + $0x10] sm:$0xf]
    %v1430 = vld [vmem:[#allocation6 + $0x14] sm:$0xf]
    %v1431 = vld [vmem:[#allocation6 + $0x18] sm:$0xf]
    %v1432 = vld [vmem:[#allocation6 + $0x1c] sm:$0xf]
    %v1433 = vld [vmem:[#allocation6 + $0x20] sm:$0xf]
    %v1434 = vld [vmem:[#allocation6 + $0x24] sm:$0xf]
    %v1435 = vld [vmem:[#allocation6 + $0x28] sm:$0xf]
    %v1436 = vld [vmem:[#allocation6 + $0x2c] sm:$0xf]
    %v1437 = vld [vmem:[#allocation6 + $0x30] sm:$0xf]
    %v1438 = vld [vmem:[#allocation6 + $0x34] sm:$0xf]
    %v1439 = vld [vmem:[#allocation6 + $0x38] sm:$0xf]
    %v1440 = vld [vmem:[#allocation6 + $0x3c] sm:$0xf]
    %v1441 = vld [vmem:[#allocation6 + $0x40] sm:$0xf]
    %v1442 = vld [vmem:[#allocation6 + $0x44] sm:$0xf]
    %v1443 = vld [vmem:[#allocation6 + $0x48] sm:$0xf]
    %v1444 = vld [vmem:[#allocation6 + $0x4c] sm:$0xf]
    %v1445 = vld [vmem:[#allocation6 + $0x50] sm:$0xf]
    %v1446 = vld [vmem:[#allocation6 + $0x54] sm:$0xf]
    %v1447 = vld [vmem:[#allocation6 + $0x58] sm:$0xf]
    %v1448 = vld [vmem:[#allocation6 + $0x5c] sm:$0xf]
    %v1449 = vld [vmem:[#allocation6 + $0x60] sm:$0xf]
    %v1450 = vld [vmem:[#allocation6 + $0x64] sm:$0xf]
    %v1451 = vld [vmem:[#allocation6 + $0x68] sm:$0xf]
    %v1452 = vld [vmem:[#allocation6 + $0x6c] sm:$0xf]
    %v1453 = vld [vmem:[#allocation6 + $0x70] sm:$0xf]
    %v1454 = vld [vmem:[#allocation6 + $0x74] sm:$0xf]
    %v1455 = vld [vmem:[#allocation6 + $0x78] sm:$0xf]
    %v1456 = vld [vmem:[#allocation6 + $0x7c] sm:$0xf]
    %v1457 = vld [vmem:[#allocation6 + $0x80] sm:$0xf]
    %v1458 = vld [vmem:[#allocation6 + $0x84] sm:$0xf]
    %v1459 = vld [vmem:[#allocation6 + $0x88] sm:$0xf]
    %v1460 = vld [vmem:[#allocation6 + $0x8c] sm:$0xf]
    %v1461 = vld [vmem:[#allocation6 + $0x90] sm:$0xf]
    %v1462 = vld [vmem:[#allocation6 + $0x94] sm:$0xf]
    %v1463 = vld [vmem:[#allocation6 + $0x98] sm:$0xf]
    %v1464 = vld [vmem:[#allocation6 + $0x9c] sm:$0xf]
    %v1465 = vld [vmem:[#allocation6 + $0xa0] sm:$0xf]
    %v1466 = vld [vmem:[#allocation6 + $0xa4] sm:$0xf]
    %v1467 = vld [vmem:[#allocation6 + $0xa8] sm:$0xf]
    %v1468 = vld [vmem:[#allocation6 + $0xac] sm:$0xf]
    %v1469 = vld [vmem:[#allocation6 + $0xb0] sm:$0xf]
    %v1470 = vld [vmem:[#allocation6 + $0xb4] sm:$0xf]
    %v1471 = vld [vmem:[#allocation6 + $0xb8] sm:$0xf]
    %v1472 = vld [vmem:[#allocation6 + $0xbc] sm:$0xf]
    %v1473 = vld [vmem:[%s4] sm:$0x1]
    %v1475 = vlaneseq
    %v1476 = vshrl.u32 %v1475, 7
    %v1477 = vsub.s32 0, %v1476
    %v1478 = vrot.slane %v1473, %v1477
    %v1528 = vunpack.c.l.b16 %v1425
    %v1529 = vunpack.c.l.b16 %v1426
    %v1530 = vunpack.c.l.b16 %v1427
    %v1531 = vunpack.c.l.b16 %v1428
    %v1532 = vunpack.c.l.b16 %v1429
    %v1533 = vunpack.c.l.b16 %v1430
    %v1534 = vunpack.c.l.b16 %v1431
    %v1535 = vunpack.c.l.b16 %v1432
    %v1536 = vunpack.c.l.b16 %v1433
    %v1537 = vunpack.c.l.b16 %v1434
    %v1538 = vunpack.c.l.b16 %v1435
    %v1539 = vunpack.c.l.b16 %v1436
    %v1540 = vunpack.c.l.b16 %v1437
    %v1541 = vunpack.c.l.b16 %v1438
    %v1542 = vunpack.c.l.b16 %v1439
    %v1543 = vunpack.c.l.b16 %v1440
    %v1544 = vunpack.c.l.b16 %v1441
    %v1545 = vunpack.c.l.b16 %v1442
    %v1546 = vunpack.c.l.b16 %v1443
    %v1547 = vunpack.c.l.b16 %v1444
    %v1548 = vunpack.c.l.b16 %v1445
    %v1549 = vunpack.c.l.b16 %v1446
    %v1550 = vunpack.c.l.b16 %v1447
    %v1551 = vunpack.c.l.b16 %v1448
    %v1552 = vunpack.c.l.b16 %v1449
    %v1553 = vunpack.c.l.b16 %v1450
    %v1554 = vunpack.c.l.b16 %v1451
    %v1555 = vunpack.c.l.b16 %v1452
    %v1556 = vunpack.c.l.b16 %v1453
    %v1557 = vunpack.c.l.b16 %v1454
    %v1558 = vunpack.c.l.b16 %v1455
    %v1559 = vunpack.c.l.b16 %v1456
    %v1560 = vunpack.c.l.b16 %v1457
    %v1561 = vunpack.c.l.b16 %v1458
    %v1562 = vunpack.c.l.b16 %v1459
    %v1563 = vunpack.c.l.b16 %v1460
    %v1564 = vunpack.c.l.b16 %v1461
    %v1565 = vunpack.c.l.b16 %v1462
    %v1566 = vunpack.c.l.b16 %v1463
    %v1567 = vunpack.c.l.b16 %v1464
    %v1568 = vunpack.c.l.b16 %v1465
    %v1569 = vunpack.c.l.b16 %v1466
    %v1570 = vunpack.c.l.b16 %v1467
    %v1571 = vunpack.c.l.b16 %v1468
    %v1572 = vunpack.c.l.b16 %v1469
    %v1573 = vunpack.c.l.b16 %v1470
    %v1574 = vunpack.c.l.b16 %v1471
    %v1575 = vunpack.c.l.b16 %v1472
    %v1576 = vpack.c.b16 %v1529, %v1528
    %v1577 = vpack.c.b16 %v1531, %v1530
    %v1578 = vpack.c.b16 %v1533, %v1532
    %v1579 = vpack.c.b16 %v1535, %v1534
    %v1580 = vpack.c.b16 %v1537, %v1536
    %v1581 = vpack.c.b16 %v1539, %v1538
    %v1582 = vpack.c.b16 %v1541, %v1540
    %v1583 = vpack.c.b16 %v1543, %v1542
    %v1584 = vpack.c.b16 %v1545, %v1544
    %v1585 = vpack.c.b16 %v1547, %v1546
    %v1586 = vpack.c.b16 %v1549, %v1548
    %v1587 = vpack.c.b16 %v1551, %v1550
    %v1588 = vpack.c.b16 %v1553, %v1552
    %v1589 = vpack.c.b16 %v1555, %v1554
    %v1590 = vpack.c.b16 %v1557, %v1556
    %v1591 = vpack.c.b16 %v1559, %v1558
    %v1592 = vpack.c.b16 %v1561, %v1560
    %v1593 = vpack.c.b16 %v1563, %v1562
    %v1594 = vpack.c.b16 %v1565, %v1564
    %v1595 = vpack.c.b16 %v1567, %v1566
    %v1596 = vpack.c.b16 %v1569, %v1568
    %v1597 = vpack.c.b16 %v1571, %v1570
    %v1598 = vpack.c.b16 %v1573, %v1572
    %v1599 = vpack.c.b16 %v1575, %v1574
    %1624 = vmatprep.subr.bf16.mxu0 0
    %1625 = vmatpush1.bf16.msra.mxu0 %v1583
    %1626 = vmatprep.subr.bf16.mxu0 0
    %1627 = vmatpush1.bf16.msra.mxu0 %v1582
    %1628 = vmatprep.subr.bf16.mxu0 0
    %1629 = vmatpush1.bf16.msra.mxu0 %v1581
    %1630 = vmatprep.subr.bf16.mxu0 0
    %1631 = vmatpush1.bf16.msra.mxu0 %v1580
    %1632 = vmatprep.subr.bf16.mxu0 0
    %1633 = vmatpush1.bf16.msra.mxu0 %v1579
    %1634 = vmatprep.subr.bf16.mxu0 0
    %1635 = vmatpush1.bf16.msra.mxu0 %v1578
    %1636 = vmatprep.subr.bf16.mxu0 0
    %1637 = vmatpush1.bf16.msra.mxu0 %v1577
    %1638 = vmatprep.subr.bf16.mxu0 0
    %1639 = vmatpush1.bf16.msra.mxu0 %v1576
    %1640 = vmatprep.subr.bf16.mxu0 0
    %1641 = vmatpush2.bf16.msra.mxu0 %v1591
    %1642 = vmatprep.subr.bf16.mxu0 0
    %1643 = vmatpush2.bf16.msra.mxu0 %v1590
    %1644 = vmatprep.subr.bf16.mxu0 0
    %1645 = vmatpush2.bf16.msra.mxu0 %v1589
    %1646 = vmatprep.subr.bf16.mxu0 0
    %1647 = vmatpush2.bf16.msra.mxu0 %v1588
    %1648 = vmatprep.subr.bf16.mxu0 0
    %1649 = vmatpush2.bf16.msra.mxu0 %v1587
    %1650 = vmatprep.subr.bf16.mxu0 0
    %1651 = vmatpush2.bf16.msra.mxu0 %v1586
    %1652 = vmatprep.subr.bf16.mxu0 0
    %1653 = vmatpush2.bf16.msra.mxu0 %v1585
    %1654 = vmatprep.subr.bf16.mxu0 0
    %1655 = vmatpush2.bf16.msra.mxu0 %v1584
    %1656 = vmatprep.mubr.bf16.mxu0 %v1423
    %1657 = vmatmul.mubr.bf16.gmra.mxu0 %v1422
    %v1658 = vpop.f32.mrf.mxu0
    %v1659 = vadd.f32 %v1478, %v1658
    %v1660 = vpop.f32.mrf.mxu0
    %v1661 = vpop.f32.mrf.mxu0
    %v1662 = vpop.f32.mrf.mxu0
    %1663 = vdwg.mxu0
    %1664 = vmatprep.subr.bf16.mxu0 0
    %1665 = vmatpush1.bf16.msra.mxu0 %v1599
    %1666 = vmatprep.subr.bf16.mxu0 0
    %1667 = vmatpush1.bf16.msra.mxu0 %v1598
    %1668 = vmatprep.subr.bf16.mxu0 0
    %1669 = vmatpush1.bf16.msra.mxu0 %v1597
    %1670 = vmatprep.subr.bf16.mxu0 0
    %1671 = vmatpush1.bf16.msra.mxu0 %v1596
    %1672 = vmatprep.subr.bf16.mxu0 0
    %1673 = vmatpush1.bf16.msra.mxu0 %v1595
    %1674 = vmatprep.subr.bf16.mxu0 0
    %1675 = vmatpush1.bf16.msra.mxu0 %v1594
    %1676 = vmatprep.subr.bf16.mxu0 0
    %1677 = vmatpush1.bf16.msra.mxu0 %v1593
    %1678 = vmatprep.subr.bf16.mxu0 0
    %1679 = vmatpush1.bf16.msra.mxu0 %v1592
    %1680 = vmatprep.subr.bf16.mxu0 0
    %1681 = vmatpush2.bf16.msra.mxu0 0
    %1682 = vmatprep.subr.bf16.mxu0 0
    %1683 = vmatpush2.bf16.msra.mxu0 0
    %1684 = vmatprep.subr.bf16.mxu0 0
    %1685 = vmatpush2.bf16.msra.mxu0 0
    %1686 = vmatprep.subr.bf16.mxu0 0
    %1687 = vmatpush2.bf16.msra.mxu0 0
    %1688 = vmatprep.subr.bf16.mxu0 0
    %1689 = vmatpush2.bf16.msra.mxu0 0
    %1690 = vmatprep.subr.bf16.mxu0 0
    %1691 = vmatpush2.bf16.msra.mxu0 0
    %1692 = vmatprep.subr.bf16.mxu0 0
    %1693 = vmatpush2.bf16.msra.mxu0 0
    %1694 = vmatprep.subr.bf16.mxu0 0
    %1695 = vmatpush2.bf16.msra.mxu0 0
    %1696 = vmatprep.mubr.bf16.mxu0 0
    %1697 = vmatmul.mubr.bf16.gmra.mxu0 %v1424
    %v1698 = vpop.f32.mrf.mxu0
    %v1699 = vadd.f32 %v1659, %v1698
    %v1700 = vpop.f32.mrf.mxu0
    %v1701 = vpop.f32.mrf.mxu0
    %v1702 = vpop.f32.mrf.mxu0
    %1703 = vdwg.mxu0
    %v1704 = vmax.f32 %v1699, 0.0
    %v1705 = vpack.c.bf16 %v1704, %v1704
    %v1706 = vld [vmem:[#allocation7] sm:$0xf]
    %v1707 = vld [vmem:[#allocation7 + $0x4] sm:$0xf]
    %v1708 = vld [vmem:[#allocation7 + $0x8] sm:$0xf]
    %v1709 = vld [vmem:[#allocation7 + $0xc] sm:$0xf]
    %v1710 = vld [vmem:[#allocation7 + $0x10] sm:$0xf]
    %v1711 = vld [vmem:[#allocation7 + $0x14] sm:$0xf]
    %v1712 = vld [vmem:[#allocation7 + $0x18] sm:$0xf]
    %v1713 = vld [vmem:[#allocation7 + $0x1c] sm:$0xf]
    %v1714 = vld [vmem:[#allocation7 + $0x20] sm:$0xf]
    %v1715 = vld [vmem:[#allocation7 + $0x24] sm:$0xf]
    %v1716 = vld [vmem:[#allocation7 + $0x28] sm:$0xf]
    %v1717 = vld [vmem:[#allocation7 + $0x2c] sm:$0xf]
    %v1718 = vld [vmem:[#allocation7 + $0x30] sm:$0xf]
    %v1719 = vld [vmem:[#allocation7 + $0x34] sm:$0xf]
    %v1720 = vld [vmem:[#allocation7 + $0x38] sm:$0xf]
    %v1721 = vld [vmem:[#allocation7 + $0x3c] sm:$0xf]
    %v1722 = vld [vmem:[%s6] sm:$0x1]
    %v1724 = vlaneseq
    %v1725 = vshrl.u32 %v1724, 7
    %v1726 = vsub.s32 0, %v1725
    %v1727 = vrot.slane %v1722, %v1726
    %v1745 = vunpack.c.l.b16 %v1706
    %v1746 = vunpack.c.l.b16 %v1707
    %v1747 = vunpack.c.l.b16 %v1708
    %v1748 = vunpack.c.l.b16 %v1709
    %v1749 = vunpack.c.l.b16 %v1710
    %v1750 = vunpack.c.l.b16 %v1711
    %v1751 = vunpack.c.l.b16 %v1712
    %v1752 = vunpack.c.l.b16 %v1713
    %v1753 = vunpack.c.l.b16 %v1714
    %v1754 = vunpack.c.l.b16 %v1715
    %v1755 = vunpack.c.l.b16 %v1716
    %v1756 = vunpack.c.l.b16 %v1717
    %v1757 = vunpack.c.l.b16 %v1718
    %v1758 = vunpack.c.l.b16 %v1719
    %v1759 = vunpack.c.l.b16 %v1720
    %v1760 = vunpack.c.l.b16 %v1721
    %v1761 = vpack.c.b16 %v1746, %v1745
    %v1762 = vpack.c.b16 %v1748, %v1747
    %v1763 = vpack.c.b16 %v1750, %v1749
    %v1764 = vpack.c.b16 %v1752, %v1751
    %v1765 = vpack.c.b16 %v1754, %v1753
    %v1766 = vpack.c.b16 %v1756, %v1755
    %v1767 = vpack.c.b16 %v1758, %v1757
    %v1768 = vpack.c.b16 %v1760, %v1759
    %1777 = vmatprep.subr.bf16.mxu0 0
    %1778 = vmatpush1.bf16.msra.mxu0 %v1768
    %1779 = vmatprep.subr.bf16.mxu0 0
    %1780 = vmatpush1.bf16.msra.mxu0 %v1767
    %1781 = vmatprep.subr.bf16.mxu0 0
    %1782 = vmatpush1.bf16.msra.mxu0 %v1766
    %1783 = vmatprep.subr.bf16.mxu0 0
    %1784 = vmatpush1.bf16.msra.mxu0 %v1765
    %1785 = vmatprep.subr.bf16.mxu0 0
    %1786 = vmatpush1.bf16.msra.mxu0 %v1764
    %1787 = vmatprep.subr.bf16.mxu0 0
    %1788 = vmatpush1.bf16.msra.mxu0 %v1763
    %1789 = vmatprep.subr.bf16.mxu0 0
    %1790 = vmatpush1.bf16.msra.mxu0 %v1762
    %1791 = vmatprep.subr.bf16.mxu0 0
    %1792 = vmatpush1.bf16.msra.mxu0 %v1761
    %1793 = vmatprep.subr.bf16.mxu0 0
    %1794 = vmatpush2.bf16.msra.mxu0 0
    %1795 = vmatprep.subr.bf16.mxu0 0
    %1796 = vmatpush2.bf16.msra.mxu0 0
    %1797 = vmatprep.subr.bf16.mxu0 0
    %1798 = vmatpush2.bf16.msra.mxu0 0
    %1799 = vmatprep.subr.bf16.mxu0 0
    %1800 = vmatpush2.bf16.msra.mxu0 0
    %1801 = vmatprep.subr.bf16.mxu0 0
    %1802 = vmatpush2.bf16.msra.mxu0 0
    %1803 = vmatprep.subr.bf16.mxu0 0
    %1804 = vmatpush2.bf16.msra.mxu0 0
    %1805 = vmatprep.subr.bf16.mxu0 0
    %1806 = vmatpush2.bf16.msra.mxu0 0
    %1807 = vmatprep.subr.bf16.mxu0 0
    %1808 = vmatpush2.bf16.msra.mxu0 0
    %1809 = vmatprep.mubr.bf16.mxu0 0
    %1810 = vmatmul.mubr.bf16.gmra.mxu0 %v1705
    %v1811 = vpop.f32.mrf.mxu0
    %v1812 = vadd.f32 %v1727, %v1811
    %v1813 = vpop.f32.mrf.mxu0
    %v1814 = vpop.f32.mrf.mxu0
    %v1815 = vpop.f32.mrf.mxu0
    %1816 = vdwg.mxu0
    %v1817 = vpack.c.bf16 %v1812, %v1812
    %1818 = vst [vmem:[%s7] sm:$0xf] %v1817
    // Predicated region
    $region46: #{batch_net_forward.1} parent=1 // pred_check
      _
    $region47: #{batch_net_forward.1} parent=1 // pred_check_branch
      %1820 = sbr.rel (0) target = $region49
    $region48: #{batch_net_forward.1} parent=1 // pred_region
      _
    $region49: #{batch_net_forward.1} parent=1 // pred_fallthru
      _
    // Predicated region
    $region50: #{batch_net_forward.1} parent=1 // pred_check
      _
    $region51: #{batch_net_forward.1} parent=1 // pred_check_branch
      %1822 = sbr.rel (0) target = $region53
    $region52: #{batch_net_forward.1} parent=1 // pred_region
      _
    $region53: #{batch_net_forward.1} parent=1 // pred_fallthru
      _
    %1823 = vsyncpa [#allocation3], 1
    %1824 = vsyncpa [#allocation5], 1
    %1825 = vsyncpa [#allocation8], 1

</llo_original>
